<compile_context>
chip_gen: v5e
topology: v5e:2x2
jax: 0.10.0
libtpu: 0.0.40
codegen_flags: <defaults>
</compile_context>

<pallas_src>
import jax
import jax.numpy as jnp
from jax import lax
from jax.experimental import pallas as pl
from jax.experimental.pallas import tpu as pltpu


# --------------------------------------------------------------------------
# helpers
# --------------------------------------------------------------------------

_LANE = 128
_TILE_CANDIDATES = (4096, 2048, 1536, 1024, 768, 512, 384, 256, 128)


def _round_up(x, m):
    return (x + m - 1) // m * m


def _pick_lane_tile(m_pad):
    """Largest candidate lane tile (multiple of 128) that divides m_pad."""
    for t in _TILE_CANDIDATES:
        if t <= m_pad and m_pad % t == 0:
            return t
    return _LANE


def _pad_lanes(a, m_pad):
    pad = m_pad - a.shape[-1]
    if pad == 0:
        return a
    cfg = [(0, 0)] * (a.ndim - 1) + [(0, pad)]
    return jnp.pad(a, cfg)


def _window_stack(x_sp, k, stride):
    """x_sp: (C, N, H, W) -> (k*k, C, N, Ho, Wo) of shifted strided views."""
    _, _, h, w = x_sp.shape
    ho = (h - k) // stride + 1
    wo = (w - k) // stride + 1
    taps = [x_sp[:, :, ky:ky + stride * ho:stride, kx:kx + stride * wo:stride]
            for ky in range(k) for kx in range(k)]
    return jnp.stack(taps, axis=0), ho, wo


def _bilinear_matrix(out_size, in_size):
    """1-D interpolation matrix matching F.interpolate(mode='bilinear',
    align_corners=False)."""
    scale = in_size / out_size
    dst = jnp.arange(out_size, dtype=jnp.float32)
    src = jnp.maximum((dst + 0.5) * scale - 0.5, 0.0)
    low = jnp.clip(jnp.floor(src).astype(jnp.int32), 0, in_size - 1)
    high = jnp.clip(low + 1, 0, in_size - 1)
    lam = src - low.astype(jnp.float32)
    return ((1.0 - lam)[:, None] * jax.nn.one_hot(low, in_size, dtype=jnp.float32)
            + lam[:, None] * jax.nn.one_hot(high, in_size, dtype=jnp.float32))


# --------------------------------------------------------------------------
# Pallas kernels (channels-first: rows = channels, lanes = flat spatial)
# --------------------------------------------------------------------------

def conv1_convf_kernel(x_ref, w1_ref, b1_ref, wf_ref, bf_ref, c1_ref, cf_ref):
    """Fused 1x1 conv1 followed by 1x1 conv_f (both outputs kept)."""
    x = x_ref[...].astype(jnp.bfloat16)
    c1 = jnp.dot(w1_ref[...], x, preferred_element_type=jnp.float32) + b1_ref[...]
    c1_ref[...] = c1
    cf_ref[...] = (jnp.dot(wf_ref[...], c1.astype(jnp.bfloat16),
                           preferred_element_type=jnp.float32) + bf_ref[...])


def matmul_bias_kernel(w_ref, p_ref, b_ref, o_ref):
    """o = W @ P + b  (conv expressed as channels-first im2col matmul)."""
    o_ref[...] = (jnp.dot(w_ref[...], p_ref[...].astype(jnp.bfloat16),
                          preferred_element_type=jnp.float32) + b_ref[...])


def matmul_f32_kernel(a_ref, b_ref, o_ref):
    """Plain f32 matmul (used for the separable bilinear resize)."""
    o_ref[...] = jnp.dot(a_ref[...], b_ref[...],
                         preferred_element_type=jnp.float32)


def maxpool_fold_kernel(p_ref, o_ref):
    """Max over the leading (pool-tap) axis; lanes stay dense."""
    o_ref[...] = jnp.max(p_ref[...], axis=0)


def gate_kernel(x_ref, c3_ref, cf_ref, w4_ref, b4_ref, o_ref):
    """Fused (c3 + cf) -> 1x1 conv4 -> sigmoid -> x * gate."""
    s = (c3_ref[...] + cf_ref[...]).astype(jnp.bfloat16)
    c4 = jnp.dot(w4_ref[...], s, preferred_element_type=jnp.float32) + b4_ref[...]
    o_ref[...] = x_ref[...] * jax.nn.sigmoid(c4)


# --------------------------------------------------------------------------
# Pallas wrappers
# --------------------------------------------------------------------------

_PARALLEL = pltpu.CompilerParams(dimension_semantics=("parallel",))


def fused_conv1_convf(x2, w1m, b1c, wfm, bfc):
    cin, m = x2.shape
    ce = w1m.shape[0]
    tm = _pick_lane_tile(m)
    return pl.pallas_call(
        conv1_convf_kernel,
        out_shape=(jax.ShapeDtypeStruct((ce, m), jnp.float32),
                   jax.ShapeDtypeStruct((ce, m), jnp.float32)),
        grid=(m // tm,),
        in_specs=[
            pl.BlockSpec((cin, tm), lambda j: (0, j)),
            pl.BlockSpec((ce, cin), lambda j: (0, 0)),
            pl.BlockSpec((ce, 1), lambda j: (0, 0)),
            pl.BlockSpec((ce, ce), lambda j: (0, 0)),
            pl.BlockSpec((ce, 1), lambda j: (0, 0)),
        ],
        out_specs=(pl.BlockSpec((ce, tm), lambda j: (0, j)),
                   pl.BlockSpec((ce, tm), lambda j: (0, j))),
        compiler_params=_PARALLEL,
    )(x2, w1m, b1c, wfm, bfc)


def conv_matmul(wm, p2, bc):
    cout, k = wm.shape
    _, m = p2.shape
    tm = _pick_lane_tile(m)
    return pl.pallas_call(
        matmul_bias_kernel,
        out_shape=jax.ShapeDtypeStruct((cout, m), jnp.float32),
        grid=(m // tm,),
        in_specs=[
            pl.BlockSpec((cout, k), lambda j: (0, 0)),
            pl.BlockSpec((k, tm), lambda j: (0, j)),
            pl.BlockSpec((cout, 1), lambda j: (0, 0)),
        ],
        out_specs=pl.BlockSpec((cout, tm), lambda j: (0, j)),
        compiler_params=_PARALLEL,
    )(wm, p2, bc)


def maxpool_fold(p):
    """p: (49, C, M_pad) -> (C, M_pad), lane-tiled parallel grid."""
    t, c, m = p.shape
    tm = _pick_lane_tile(m)
    return pl.pallas_call(
        maxpool_fold_kernel,
        out_shape=jax.ShapeDtypeStruct((c, m), jnp.float32),
        grid=(m // tm,),
        in_specs=[pl.BlockSpec((t, c, tm), lambda j: (0, 0, j))],
        out_specs=pl.BlockSpec((c, tm), lambda j: (0, j)),
        compiler_params=_PARALLEL,
    )(p)


def resize_matmul(s, kt):
    """(r, q) @ (q, p) f32 matmul, lane-tiled over p (p % 128 == 0)."""
    r, q = s.shape
    _, p = kt.shape
    tp = _pick_lane_tile(p)
    return pl.pallas_call(
        matmul_f32_kernel,
        out_shape=jax.ShapeDtypeStruct((r, p), jnp.float32),
        grid=(p // tp,),
        in_specs=[pl.BlockSpec((r, q), lambda j: (0, 0)),
                  pl.BlockSpec((q, tp), lambda j: (0, j))],
        out_specs=pl.BlockSpec((r, tp), lambda j: (0, j)),
        compiler_params=_PARALLEL,
    )(s, kt)


def fused_gate(x2, c3r, cf, w4m, b4c):
    cfeat, m = x2.shape
    ce = c3r.shape[0]
    tm = _pick_lane_tile(m)
    return pl.pallas_call(
        gate_kernel,
        out_shape=jax.ShapeDtypeStruct((cfeat, m), jnp.float32),
        grid=(m // tm,),
        in_specs=[
            pl.BlockSpec((cfeat, tm), lambda j: (0, j)),
            pl.BlockSpec((ce, tm), lambda j: (0, j)),
            pl.BlockSpec((ce, tm), lambda j: (0, j)),
            pl.BlockSpec((cfeat, ce), lambda j: (0, 0)),
            pl.BlockSpec((cfeat, 1), lambda j: (0, 0)),
        ],
        out_specs=pl.BlockSpec((cfeat, tm), lambda j: (0, j)),
        compiler_params=_PARALLEL,
    )(x2, c3r, cf, w4m, b4c)


def bilinear_upsample_separable(c3_flat, ce, n, h2, w2, h, w):
    """Separable bilinear upsample: Rh @ X @ Rw^T done as two lane-tiled
    Pallas matmuls.  Returns (ce, n*h*w) channels-first layout."""
    rh = _bilinear_matrix(h, h2)                                  # (H, h2)
    rwT = _bilinear_matrix(w, w2).T                               # (w2, W)

    # step A: contract over h2  ->  (H, ce*n*w2)
    xt = (c3_flat.reshape(ce, n, h2, w2)
          .transpose(2, 0, 1, 3).reshape(h2, ce * n * w2))
    la = _round_up(ce * n * w2, _LANE)
    za = resize_matmul(rh, _pad_lanes(xt, la))[:, :ce * n * w2]   # (H, ce*n*w2)

    # step B: contract over w2  ->  (ce*n*H, W)
    zb = (za.reshape(h, ce, n, w2)
          .transpose(1, 2, 0, 3).reshape(ce * n * h, w2))
    lb = _round_up(w, _LANE)
    ob = resize_matmul(zb, _pad_lanes(rwT, lb))[:, :w]            # (ce*n*H, W)
    return ob.reshape(ce, n * h * w)


# --------------------------------------------------------------------------
# parameter preparation & ESA forward
# --------------------------------------------------------------------------

def _prep_params(params):
    """PyTorch-layout conv params -> channels-first matmul layout (bf16 weights)."""
    ce = params["w1"].shape[0]
    nf = params["w1"].shape[1]
    bf16 = jnp.bfloat16

    def mat1x1(w):                       # (Cout, Cin, 1, 1) -> (Cout, Cin)
        return w.reshape(w.shape[0], w.shape[1])

    def mat3x3(w):                       # (Cout, Cin, 3, 3) -> (Cout, 9*Cin), K=(ky,kx,cin)
        return jnp.transpose(w, (0, 2, 3, 1)).reshape(w.shape[0], -1)

    return dict(
        w1=mat1x1(params["w1"]).astype(bf16), b1=params["b1"].reshape(ce, 1),
        wf=mat1x1(params["wf"]).astype(bf16), bf=params["bf"].reshape(ce, 1),
        w2=mat3x3(params["w2"]).astype(bf16), b2=params["b2"].reshape(ce, 1),
        w3=mat3x3(params["w3"]).astype(bf16), b3=params["b3"].reshape(ce, 1),
        w4=mat1x1(params["w4"]).astype(bf16), b4=params["b4"].reshape(nf, 1),
    )


def esa_block(x_nchw, params):
    """ESA_Blcok forward.  x_nchw: (N, n_feats, H, W) float32 (PyTorch layout)."""
    n, nf, h, w = x_nchw.shape
    ce = params["w1"].shape[0]
    pp = _prep_params(params)

    # ---- channels-first lane-dense flat view: (C, N*H*W), lane-padded ----
    m = n * h * w
    m_pad = _round_up(m, _LANE)
    x2 = _pad_lanes(jnp.transpose(x_nchw, (1, 0, 2, 3)).reshape(nf, m), m_pad)

    # ---- conv1 (1x1) + conv_f (1x1), fused into one kernel ----
    c1_, cf = fused_conv1_convf(x2, pp["w1"], pp["b1"], pp["wf"], pp["bf"])

    # ---- conv2: 3x3, stride 2, no padding ----
    # TODO(synk): stride-2 im2col stays as XLA slicing glue; an in-kernel 9-tap
    # accumulation over overlapping BlockSpec windows would remove this HBM pass.
    c1_sp = c1_[:, :m].reshape(ce, n, h, w)
    taps2, h1, w1_ = _window_stack(c1_sp, 3, 2)
    m2 = n * h1 * w1_
    m2_pad = _round_up(m2, _LANE)
    p2 = _pad_lanes(taps2.reshape(9 * ce, m2), m2_pad)
    c1 = conv_matmul(pp["w2"], p2, pp["b2"])                    # (ce, m2_pad)

    # ---- 7x7 / stride-3 max pool as a lane-tiled max fold ----
    c1_sp = c1[:, :m2].reshape(ce, n, h1, w1_)
    tapsp, h2, w2_ = _window_stack(c1_sp, 7, 3)
    m3 = n * h2 * w2_
    m3_pad = _round_up(m3, _LANE)
    pool_in = _pad_lanes(tapsp.reshape(49, ce, m3), m3_pad)
    v_max = maxpool_fold(pool_in)                               # (ce, m3_pad)

    # ---- conv3: 3x3, stride 1, padding 1 ----
    v_sp = v_max[:, :m3].reshape(ce, n, h2, w2_)
    v_sp = jnp.pad(v_sp, ((0, 0), (0, 0), (1, 1), (1, 1)))
    taps3, _, _ = _window_stack(v_sp, 3, 1)
    p3 = _pad_lanes(taps3.reshape(9 * ce, m3), m3_pad)
    c3 = conv_matmul(pp["w3"], p3, pp["b3"])                    # (ce, m3_pad)

    # ---- separable bilinear upsample to (H, W): two small matmuls ----
    c3_full = bilinear_upsample_separable(c3[:, :m3], ce, n, h2, w2_, h, w)
    c3r = _pad_lanes(c3_full, m_pad)                            # (ce, m_pad)

    # ---- (c3 + cf) -> conv4 (1x1) -> sigmoid -> x * gate, fused ----
    out2 = fused_gate(x2, c3r, cf, pp["w4"], pp["b4"])          # (nf, m_pad)
    return jnp.transpose(out2[:, :m].reshape(nf, n, h, w), (1, 0, 2, 3))


# --------------------------------------------------------------------------
# pure-JAX reference (for a numerical sanity check, f32)
# --------------------------------------------------------------------------

def esa_block_reference(x, params):
    def conv(inp, wt, bias, stride=1, padding=0):
        y = lax.conv_general_dilated(
            inp, wt, window_strides=(stride, stride),
            padding=[(padding, padding), (padding, padding)],
            dimension_numbers=("NCHW", "OIHW", "NCHW"))
        return y + bias.reshape(1, -1, 1, 1)

    c1_ = conv(x, params["w1"], params["b1"])
    c1 = conv(c1_, params["w2"], params["b2"], stride=2)
    v_max = lax.reduce_window(c1, -jnp.inf, lax.max,
                              (1, 1, 7, 7), (1, 1, 3, 3), "VALID")
    c3 = conv(v_max, params["w3"], params["b3"], padding=1)
    h2, w2 = c3.shape[2], c3.shape[3]
    rh = _bilinear_matrix(x.shape[2], h2)
    rw = _bilinear_matrix(x.shape[3], w2)
    c3 = jnp.einsum("hk,nckl,wl->nchw", rh, c3, rw)
    cf = conv(c1_, params["wf"], params["bf"])
    c4 = conv(c3 + cf, params["w4"], params["b4"])
    return x * jax.nn.sigmoid(c4)


# --------------------------------------------------------------------------
# init & demo
# --------------------------------------------------------------------------

def init_params(key, esa_channels, n_feats):
    ks = jax.random.split(key, 10)

    def conv_init(kw, kb, cout, cin, kh, kwd):
        wt = jax.random.normal(kw, (cout, cin, kh, kwd), jnp.float32) * 0.1
        bs = jax.random.normal(kb, (cout,), jnp.float32) * 0.1
        return wt, bs

    w1, b1 = conv_init(ks[0], ks[1], esa_channels, n_feats, 1, 1)      # conv1
    wf, bf = conv_init(ks[2], ks[3], esa_channels, esa_channels, 1, 1)  # conv_f
    w2, b2 = conv_init(ks[4], ks[5], esa_channels, esa_channels, 3, 3)  # conv2
    w3, b3 = conv_init(ks[6], ks[7], esa_channels, esa_channels, 3, 3)  # conv3
    w4, b4 = conv_init(ks[8], ks[9], n_feats, esa_channels, 1, 1)       # conv4
    return dict(w1=w1, b1=b1, wf=wf, bf=bf, w2=w2, b2=b2,
                w3=w3, b3=b3, w4=w4, b4=b4)


if __name__ == "__main__":
    esa_channels, n_feats = 4, 8
    N, H, W = 2, 24, 24

    key = jax.random.PRNGKey(0)
    k_x, k_p = jax.random.split(key)
    x = jax.random.normal(k_x, (N, n_feats, H, W), jnp.float32)   # NCHW (PyTorch)
    params = init_params(k_p, esa_channels, n_feats)

    out = jax.block_until_ready(jax.jit(esa_block)(x, params))
    assert out.shape == (N, n_feats, H, W)

    ref = jax.block_until_ready(jax.jit(esa_block_reference)(x, params))
    max_err = float(jnp.max(jnp.abs(out - ref)))
    # bf16 MXU operands -> allow a generous (but still tight) tolerance vs f32.
    assert max_err < 5e-2, f"mismatch vs reference: max abs diff = {max_err}"

    print("KERNEL_OK")
</pallas_src>

<mosaic_0001>
module attributes {stable_mosaic.version = 11 : i64} {
  func.func @conv1_convf_kernel(%arg0: i32, %arg1: memref<8x384xf32, #tpu.memory_space<vmem>>, %arg2: memref<4x8xbf16, #tpu.memory_space<vmem>>, %arg3: memref<4x1xf32, #tpu.memory_space<vmem>>, %arg4: memref<4x4xbf16, #tpu.memory_space<vmem>>, %arg5: memref<4x1xf32, #tpu.memory_space<vmem>>, %arg6: memref<4x384xf32, #tpu.memory_space<vmem>>, %arg7: memref<4x384xf32, #tpu.memory_space<vmem>>) attributes {dimension_semantics = [#tpu.dimension_semantics<parallel>], iteration_bounds = array<i64: 3>, scalar_prefetch = 0 : i64, scratch_operands = 0 : i64, tpu.core_type = #tpu.core_type<tc>, window_params = [{transform_indices = @transform_0, window_bounds = array<i64: 8, 384>}, {pipeline_mode = #tpu.pipeline_mode<synchronous>, transform_indices = @transform_1, window_bounds = array<i64: 4, 8>}, {pipeline_mode = #tpu.pipeline_mode<synchronous>, transform_indices = @transform_2, window_bounds = array<i64: 4, 1>}, {pipeline_mode = #tpu.pipeline_mode<synchronous>, transform_indices = @transform_3, window_bounds = array<i64: 4, 4>}, {pipeline_mode = #tpu.pipeline_mode<synchronous>, transform_indices = @transform_4, window_bounds = array<i64: 4, 1>}, {transform_indices = @transform_5, window_bounds = array<i64: 4, 384>}, {transform_indices = @transform_6, window_bounds = array<i64: 4, 384>}]} {
    %c0 = arith.constant 0 : index
    %c0_0 = arith.constant 0 : index
    %0 = vector.load %arg1[%c0, %c0_0] : memref<8x384xf32, #tpu.memory_space<vmem>>, vector<8x384xf32>
    %1 = arith.truncf %0 : vector<8x384xf32> to vector<8x384xbf16>
    %c0_1 = arith.constant 0 : index
    %c0_2 = arith.constant 0 : index
    %2 = vector.load %arg2[%c0_1, %c0_2] : memref<4x8xbf16, #tpu.memory_space<vmem>>, vector<4x8xbf16>
    %cst = arith.constant dense<0.000000e+00> : vector<4x384xf32>
    %3 = tpu.matmul %2, %1, %cst {dimension_numbers = #tpu.dot_dimension_numbers<[1], [0], [0], [1], [0, 0, 1, 1], [], []>} : vector<4x8xbf16>, vector<8x384xbf16>, vector<4x384xf32> -> vector<4x384xf32>
    %c0_3 = arith.constant 0 : index
    %c0_4 = arith.constant 0 : index
    %4 = vector.load %arg3[%c0_3, %c0_4] : memref<4x1xf32, #tpu.memory_space<vmem>>, vector<4x1xf32>
    %5 = vector.broadcast %4 : vector<4x1xf32> to vector<4x384xf32>
    %6 = arith.addf %3, %5 : vector<4x384xf32>
    %c0_5 = arith.constant 0 : index
    %c0_6 = arith.constant 0 : index
    %7 = vector.load %arg6[%c0_5, %c0_6] : memref<4x384xf32, #tpu.memory_space<vmem>>, vector<4x384xf32>
    tpu.vector_store %arg6[%c0_5, %c0_6], %6 {strides = array<i32>} : memref<4x384xf32, #tpu.memory_space<vmem>>, vector<4x384xf32>,
    %c0_7 = arith.constant 0 : index
    %c0_8 = arith.constant 0 : index
    %8 = vector.load %arg4[%c0_7, %c0_8] : memref<4x4xbf16, #tpu.memory_space<vmem>>, vector<4x4xbf16>
    %9 = arith.truncf %6 : vector<4x384xf32> to vector<4x384xbf16>
    %cst_9 = arith.constant dense<0.000000e+00> : vector<4x384xf32>
    %10 = tpu.matmul %8, %9, %cst_9 {dimension_numbers = #tpu.dot_dimension_numbers<[1], [0], [0], [1], [0, 0, 1, 1], [], []>} : vector<4x4xbf16>, vector<4x384xbf16>, vector<4x384xf32> -> vector<4x384xf32>
    %c0_10 = arith.constant 0 : index
    %c0_11 = arith.constant 0 : index
    %11 = vector.load %arg5[%c0_10, %c0_11] : memref<4x1xf32, #tpu.memory_space<vmem>>, vector<4x1xf32>
    %12 = vector.broadcast %11 : vector<4x1xf32> to vector<4x384xf32>
    %13 = arith.addf %10, %12 : vector<4x384xf32>
    %c0_12 = arith.constant 0 : index
    %c0_13 = arith.constant 0 : index
    %14 = vector.load %arg7[%c0_12, %c0_13] : memref<4x384xf32, #tpu.memory_space<vmem>>, vector<4x384xf32>
    tpu.vector_store %arg7[%c0_12, %c0_13], %13 {strides = array<i32>} : memref<4x384xf32, #tpu.memory_space<vmem>>, vector<4x384xf32>,
    return
  }
  func.func @transform_0(%arg0: i32) -> (i32, i32) {
    %c0_i32 = arith.constant 0 : i32
    %c0_i32_0 = arith.constant 0 : i32
    return %c0_i32, %arg0 : i32, i32
  }
  func.func @transform_1(%arg0: i32) -> (i32, i32) {
    %c0_i32 = arith.constant 0 : i32
    %c0_i32_0 = arith.constant 0 : i32
    %c0_i32_1 = arith.constant 0 : i32
    return %c0_i32, %c0_i32_0 : i32, i32
  }
  func.func @transform_2(%arg0: i32) -> (i32, i32) {
    %c0_i32 = arith.constant 0 : i32
    %c0_i32_0 = arith.constant 0 : i32
    %c0_i32_1 = arith.constant 0 : i32
    return %c0_i32, %c0_i32_0 : i32, i32
  }
  func.func @transform_3(%arg0: i32) -> (i32, i32) {
    %c0_i32 = arith.constant 0 : i32
    %c0_i32_0 = arith.constant 0 : i32
    %c0_i32_1 = arith.constant 0 : i32
    return %c0_i32, %c0_i32_0 : i32, i32
  }
  func.func @transform_4(%arg0: i32) -> (i32, i32) {
    %c0_i32 = arith.constant 0 : i32
    %c0_i32_0 = arith.constant 0 : i32
    %c0_i32_1 = arith.constant 0 : i32
    return %c0_i32, %c0_i32_0 : i32, i32
  }
  func.func @transform_5(%arg0: i32) -> (i32, i32) {
    %c0_i32 = arith.constant 0 : i32
    %c0_i32_0 = arith.constant 0 : i32
    return %c0_i32, %arg0 : i32, i32
  }
  func.func @transform_6(%arg0: i32) -> (i32, i32) {
    %c0_i32 = arith.constant 0 : i32
    %c0_i32_0 = arith.constant 0 : i32
    return %c0_i32, %arg0 : i32, i32
  }
}

module attributes {stable_mosaic.version = 11 : i64} {
  func.func @matmul_bias_kernel(%arg0: i32, %arg1: memref<4x36xbf16, #tpu.memory_space<vmem>>, %arg2: memref<36x256xf32, #tpu.memory_space<vmem>>, %arg3: memref<4x1xf32, #tpu.memory_space<vmem>>, %arg4: memref<4x256xf32, #tpu.memory_space<vmem>>) attributes {dimension_semantics = [#tpu.dimension_semantics<parallel>], iteration_bounds = array<i64: 1>, scalar_prefetch = 0 : i64, scratch_operands = 0 : i64, tpu.core_type = #tpu.core_type<tc>, window_params = [{pipeline_mode = #tpu.pipeline_mode<synchronous>, transform_indices = @transform_0, window_bounds = array<i64: 4, 36>}, {transform_indices = @transform_1, window_bounds = array<i64: 36, 256>}, {pipeline_mode = #tpu.pipeline_mode<synchronous>, transform_indices = @transform_2, window_bounds = array<i64: 4, 1>}, {transform_indices = @transform_3, window_bounds = array<i64: 4, 256>}]} {
    %c0 = arith.constant 0 : index
    %c0_0 = arith.constant 0 : index
    %0 = vector.load %arg1[%c0, %c0_0] : memref<4x36xbf16, #tpu.memory_space<vmem>>, vector<4x36xbf16>
    %c0_1 = arith.constant 0 : index
    %c0_2 = arith.constant 0 : index
    %1 = vector.load %arg2[%c0_1, %c0_2] : memref<36x256xf32, #tpu.memory_space<vmem>>, vector<36x256xf32>
    %2 = arith.truncf %1 : vector<36x256xf32> to vector<36x256xbf16>
    %cst = arith.constant dense<0.000000e+00> : vector<4x256xf32>
    %3 = tpu.matmul %0, %2, %cst {dimension_numbers = #tpu.dot_dimension_numbers<[1], [0], [0], [1], [0, 0, 1, 1], [], []>} : vector<4x36xbf16>, vector<36x256xbf16>, vector<4x256xf32> -> vector<4x256xf32>
    %c0_3 = arith.constant 0 : index
    %c0_4 = arith.constant 0 : index
    %4 = vector.load %arg3[%c0_3, %c0_4] : memref<4x1xf32, #tpu.memory_space<vmem>>, vector<4x1xf32>
    %5 = vector.broadcast %4 : vector<4x1xf32> to vector<4x256xf32>
    %6 = arith.addf %3, %5 : vector<4x256xf32>
    %c0_5 = arith.constant 0 : index
    %c0_6 = arith.constant 0 : index
    %7 = vector.load %arg4[%c0_5, %c0_6] : memref<4x256xf32, #tpu.memory_space<vmem>>, vector<4x256xf32>
    tpu.vector_store %arg4[%c0_5, %c0_6], %6 {strides = array<i32>} : memref<4x256xf32, #tpu.memory_space<vmem>>, vector<4x256xf32>,
    return
  }
  func.func @transform_0(%arg0: i32) -> (i32, i32) {
    %c0_i32 = arith.constant 0 : i32
    %c0_i32_0 = arith.constant 0 : i32
    %c0_i32_1 = arith.constant 0 : i32
    return %c0_i32, %c0_i32_0 : i32, i32
  }
  func.func @transform_1(%arg0: i32) -> (i32, i32) {
    %c0_i32 = arith.constant 0 : i32
    %c0_i32_0 = arith.constant 0 : i32
    return %c0_i32, %arg0 : i32, i32
  }
  func.func @transform_2(%arg0: i32) -> (i32, i32) {
    %c0_i32 = arith.constant 0 : i32
    %c0_i32_0 = arith.constant 0 : i32
    %c0_i32_1 = arith.constant 0 : i32
    return %c0_i32, %c0_i32_0 : i32, i32
  }
  func.func @transform_3(%arg0: i32) -> (i32, i32) {
    %c0_i32 = arith.constant 0 : i32
    %c0_i32_0 = arith.constant 0 : i32
    return %c0_i32, %arg0 : i32, i32
  }
}

module attributes {stable_mosaic.version = 11 : i64} {
  func.func @maxpool_fold_kernel(%arg0: i32, %arg1: memref<49x4x128xf32, #tpu.memory_space<vmem>>, %arg2: memref<4x128xf32, #tpu.memory_space<vmem>>) attributes {dimension_semantics = [#tpu.dimension_semantics<parallel>], iteration_bounds = array<i64: 1>, scalar_prefetch = 0 : i64, scratch_operands = 0 : i64, tpu.core_type = #tpu.core_type<tc>, window_params = [{transform_indices = @transform_0, window_bounds = array<i64: 49, 4, 128>}, {transform_indices = @transform_1, window_bounds = array<i64: 4, 128>}]} {
    %c0 = arith.constant 0 : index
    %c0_0 = arith.constant 0 : index
    %c0_1 = arith.constant 0 : index
    %0 = vector.load %arg1[%c0, %c0_0, %c0_1] : memref<49x4x128xf32, #tpu.memory_space<vmem>>, vector<49x4x128xf32>
    %cst = arith.constant dense<0xFF800000> : vector<4x128xf32>
    %1 = vector.multi_reduction <maximumf>, %0, %cst [0] : vector<49x4x128xf32> to vector<4x128xf32>
    %c0_2 = arith.constant 0 : index
    %c0_3 = arith.constant 0 : index
    %2 = vector.load %arg2[%c0_2, %c0_3] : memref<4x128xf32, #tpu.memory_space<vmem>>, vector<4x128xf32>
    tpu.vector_store %arg2[%c0_2, %c0_3], %1 {strides = array<i32>} : memref<4x128xf32, #tpu.memory_space<vmem>>, vector<4x128xf32>,
    return
  }
  func.func @transform_0(%arg0: i32) -> (i32, i32, i32) {
    %c0_i32 = arith.constant 0 : i32
    %c0_i32_0 = arith.constant 0 : i32
    %c0_i32_1 = arith.constant 0 : i32
    return %c0_i32, %c0_i32_0, %arg0 : i32, i32, i32
  }
  func.func @transform_1(%arg0: i32) -> (i32, i32) {
    %c0_i32 = arith.constant 0 : i32
    %c0_i32_0 = arith.constant 0 : i32
    return %c0_i32, %arg0 : i32, i32
  }
}

module attributes {stable_mosaic.version = 11 : i64} {
  func.func @matmul_bias_kernel(%arg0: i32, %arg1: memref<4x36xbf16, #tpu.memory_space<vmem>>, %arg2: memref<36x128xf32, #tpu.memory_space<vmem>>, %arg3: memref<4x1xf32, #tpu.memory_space<vmem>>, %arg4: memref<4x128xf32, #tpu.memory_space<vmem>>) attributes {dimension_semantics = [#tpu.dimension_semantics<parallel>], iteration_bounds = array<i64: 1>, scalar_prefetch = 0 : i64, scratch_operands = 0 : i64, tpu.core_type = #tpu.core_type<tc>, window_params = [{pipeline_mode = #tpu.pipeline_mode<synchronous>, transform_indices = @transform_0, window_bounds = array<i64: 4, 36>}, {transform_indices = @transform_1, window_bounds = array<i64: 36, 128>}, {pipeline_mode = #tpu.pipeline_mode<synchronous>, transform_indices = @transform_2, window_bounds = array<i64: 4, 1>}, {transform_indices = @transform_3, window_bounds = array<i64: 4, 128>}]} {
    %c0 = arith.constant 0 : index
    %c0_0 = arith.constant 0 : index
    %0 = vector.load %arg1[%c0, %c0_0] : memref<4x36xbf16, #tpu.memory_space<vmem>>, vector<4x36xbf16>
    %c0_1 = arith.constant 0 : index
    %c0_2 = arith.constant 0 : index
    %1 = vector.load %arg2[%c0_1, %c0_2] : memref<36x128xf32, #tpu.memory_space<vmem>>, vector<36x128xf32>
    %2 = arith.truncf %1 : vector<36x128xf32> to vector<36x128xbf16>
    %cst = arith.constant dense<0.000000e+00> : vector<4x128xf32>
    %3 = tpu.matmul %0, %2, %cst {dimension_numbers = #tpu.dot_dimension_numbers<[1], [0], [0], [1], [0, 0, 1, 1], [], []>} : vector<4x36xbf16>, vector<36x128xbf16>, vector<4x128xf32> -> vector<4x128xf32>
    %c0_3 = arith.constant 0 : index
    %c0_4 = arith.constant 0 : index
    %4 = vector.load %arg3[%c0_3, %c0_4] : memref<4x1xf32, #tpu.memory_space<vmem>>, vector<4x1xf32>
    %5 = vector.broadcast %4 : vector<4x1xf32> to vector<4x128xf32>
    %6 = arith.addf %3, %5 : vector<4x128xf32>
    %c0_5 = arith.constant 0 : index
    %c0_6 = arith.constant 0 : index
    %7 = vector.load %arg4[%c0_5, %c0_6] : memref<4x128xf32, #tpu.memory_space<vmem>>, vector<4x128xf32>
    tpu.vector_store %arg4[%c0_5, %c0_6], %6 {strides = array<i32>} : memref<4x128xf32, #tpu.memory_space<vmem>>, vector<4x128xf32>,
    return
  }
  func.func @transform_0(%arg0: i32) -> (i32, i32) {
    %c0_i32 = arith.constant 0 : i32
    %c0_i32_0 = arith.constant 0 : i32
    %c0_i32_1 = arith.constant 0 : i32
    return %c0_i32, %c0_i32_0 : i32, i32
  }
  func.func @transform_1(%arg0: i32) -> (i32, i32) {
    %c0_i32 = arith.constant 0 : i32
    %c0_i32_0 = arith.constant 0 : i32
    return %c0_i32, %arg0 : i32, i32
  }
  func.func @transform_2(%arg0: i32) -> (i32, i32) {
    %c0_i32 = arith.constant 0 : i32
    %c0_i32_0 = arith.constant 0 : i32
    %c0_i32_1 = arith.constant 0 : i32
    return %c0_i32, %c0_i32_0 : i32, i32
  }
  func.func @transform_3(%arg0: i32) -> (i32, i32) {
    %c0_i32 = arith.constant 0 : i32
    %c0_i32_0 = arith.constant 0 : i32
    return %c0_i32, %arg0 : i32, i32
  }
}

module attributes {stable_mosaic.version = 11 : i64} {
  func.func @matmul_f32_kernel(%arg0: i32, %arg1: memref<24x2xf32, #tpu.memory_space<vmem>>, %arg2: memref<2x128xf32, #tpu.memory_space<vmem>>, %arg3: memref<24x128xf32, #tpu.memory_space<vmem>>) attributes {dimension_semantics = [#tpu.dimension_semantics<parallel>], iteration_bounds = array<i64: 1>, scalar_prefetch = 0 : i64, scratch_operands = 0 : i64, tpu.core_type = #tpu.core_type<tc>, window_params = [{pipeline_mode = #tpu.pipeline_mode<synchronous>, transform_indices = @transform_0, window_bounds = array<i64: 24, 2>}, {transform_indices = @transform_1, window_bounds = array<i64: 2, 128>}, {transform_indices = @transform_2, window_bounds = array<i64: 24, 128>}]} {
    %c0 = arith.constant 0 : index
    %c0_0 = arith.constant 0 : index
    %0 = vector.load %arg1[%c0, %c0_0] : memref<24x2xf32, #tpu.memory_space<vmem>>, vector<24x2xf32>
    %c0_1 = arith.constant 0 : index
    %c0_2 = arith.constant 0 : index
    %1 = vector.load %arg2[%c0_1, %c0_2] : memref<2x128xf32, #tpu.memory_space<vmem>>, vector<2x128xf32>
    %cst = arith.constant dense<0.000000e+00> : vector<24x128xf32>
    %2 = tpu.matmul %0, %1, %cst {dimension_numbers = #tpu.dot_dimension_numbers<[1], [0], [0], [1], [0, 0, 1, 1], [], []>} : vector<24x2xf32>, vector<2x128xf32>, vector<24x128xf32> -> vector<24x128xf32>
    %c0_3 = arith.constant 0 : index
    %c0_4 = arith.constant 0 : index
    %3 = vector.load %arg3[%c0_3, %c0_4] : memref<24x128xf32, #tpu.memory_space<vmem>>, vector<24x128xf32>
    tpu.vector_store %arg3[%c0_3, %c0_4], %2 {strides = array<i32>} : memref<24x128xf32, #tpu.memory_space<vmem>>, vector<24x128xf32>,
    return
  }
  func.func @transform_0(%arg0: i32) -> (i32, i32) {
    %c0_i32 = arith.constant 0 : i32
    %c0_i32_0 = arith.constant 0 : i32
    %c0_i32_1 = arith.constant 0 : i32
    return %c0_i32, %c0_i32_0 : i32, i32
  }
  func.func @transform_1(%arg0: i32) -> (i32, i32) {
    %c0_i32 = arith.constant 0 : i32
    %c0_i32_0 = arith.constant 0 : i32
    return %c0_i32, %arg0 : i32, i32
  }
  func.func @transform_2(%arg0: i32) -> (i32, i32) {
    %c0_i32 = arith.constant 0 : i32
    %c0_i32_0 = arith.constant 0 : i32
    return %c0_i32, %arg0 : i32, i32
  }
}

module attributes {stable_mosaic.version = 11 : i64} {
  func.func @matmul_f32_kernel(%arg0: i32, %arg1: memref<192x2xf32, #tpu.memory_space<vmem>>, %arg2: memref<2x128xf32, #tpu.memory_space<vmem>>, %arg3: memref<192x128xf32, #tpu.memory_space<vmem>>) attributes {dimension_semantics = [#tpu.dimension_semantics<parallel>], iteration_bounds = array<i64: 1>, scalar_prefetch = 0 : i64, scratch_operands = 0 : i64, tpu.core_type = #tpu.core_type<tc>, window_params = [{pipeline_mode = #tpu.pipeline_mode<synchronous>, transform_indices = @transform_0, window_bounds = array<i64: 192, 2>}, {transform_indices = @transform_1, window_bounds = array<i64: 2, 128>}, {transform_indices = @transform_2, window_bounds = array<i64: 192, 128>}]} {
    %c0 = arith.constant 0 : index
    %c0_0 = arith.constant 0 : index
    %0 = vector.load %arg1[%c0, %c0_0] : memref<192x2xf32, #tpu.memory_space<vmem>>, vector<192x2xf32>
    %c0_1 = arith.constant 0 : index
    %c0_2 = arith.constant 0 : index
    %1 = vector.load %arg2[%c0_1, %c0_2] : memref<2x128xf32, #tpu.memory_space<vmem>>, vector<2x128xf32>
    %cst = arith.constant dense<0.000000e+00> : vector<192x128xf32>
    %2 = tpu.matmul %0, %1, %cst {dimension_numbers = #tpu.dot_dimension_numbers<[1], [0], [0], [1], [0, 0, 1, 1], [], []>} : vector<192x2xf32>, vector<2x128xf32>, vector<192x128xf32> -> vector<192x128xf32>
    %c0_3 = arith.constant 0 : index
    %c0_4 = arith.constant 0 : index
    %3 = vector.load %arg3[%c0_3, %c0_4] : memref<192x128xf32, #tpu.memory_space<vmem>>, vector<192x128xf32>
    tpu.vector_store %arg3[%c0_3, %c0_4], %2 {strides = array<i32>} : memref<192x128xf32, #tpu.memory_space<vmem>>, vector<192x128xf32>,
    return
  }
  func.func @transform_0(%arg0: i32) -> (i32, i32) {
    %c0_i32 = arith.constant 0 : i32
    %c0_i32_0 = arith.constant 0 : i32
    %c0_i32_1 = arith.constant 0 : i32
    return %c0_i32, %c0_i32_0 : i32, i32
  }
  func.func @transform_1(%arg0: i32) -> (i32, i32) {
    %c0_i32 = arith.constant 0 : i32
    %c0_i32_0 = arith.constant 0 : i32
    return %c0_i32, %arg0 : i32, i32
  }
  func.func @transform_2(%arg0: i32) -> (i32, i32) {
    %c0_i32 = arith.constant 0 : i32
    %c0_i32_0 = arith.constant 0 : i32
    return %c0_i32, %arg0 : i32, i32
  }
}

module attributes {stable_mosaic.version = 11 : i64} {
  func.func @gate_kernel(%arg0: i32, %arg1: memref<8x384xf32, #tpu.memory_space<vmem>>, %arg2: memref<4x384xf32, #tpu.memory_space<vmem>>, %arg3: memref<4x384xf32, #tpu.memory_space<vmem>>, %arg4: memref<8x4xbf16, #tpu.memory_space<vmem>>, %arg5: memref<8x1xf32, #tpu.memory_space<vmem>>, %arg6: memref<8x384xf32, #tpu.memory_space<vmem>>) attributes {dimension_semantics = [#tpu.dimension_semantics<parallel>], iteration_bounds = array<i64: 3>, scalar_prefetch = 0 : i64, scratch_operands = 0 : i64, tpu.core_type = #tpu.core_type<tc>, window_params = [{transform_indices = @transform_0, window_bounds = array<i64: 8, 384>}, {transform_indices = @transform_1, window_bounds = array<i64: 4, 384>}, {transform_indices = @transform_2, window_bounds = array<i64: 4, 384>}, {pipeline_mode = #tpu.pipeline_mode<synchronous>, transform_indices = @transform_3, window_bounds = array<i64: 8, 4>}, {pipeline_mode = #tpu.pipeline_mode<synchronous>, transform_indices = @transform_4, window_bounds = array<i64: 8, 1>}, {transform_indices = @transform_5, window_bounds = array<i64: 8, 384>}]} {
    %c0 = arith.constant 0 : index
    %c0_0 = arith.constant 0 : index
    %0 = vector.load %arg2[%c0, %c0_0] : memref<4x384xf32, #tpu.memory_space<vmem>>, vector<4x384xf32>
    %c0_1 = arith.constant 0 : index
    %c0_2 = arith.constant 0 : index
    %1 = vector.load %arg3[%c0_1, %c0_2] : memref<4x384xf32, #tpu.memory_space<vmem>>, vector<4x384xf32>
    %2 = arith.addf %0, %1 : vector<4x384xf32>
    %3 = arith.truncf %2 : vector<4x384xf32> to vector<4x384xbf16>
    %c0_3 = arith.constant 0 : index
    %c0_4 = arith.constant 0 : index
    %4 = vector.load %arg4[%c0_3, %c0_4] : memref<8x4xbf16, #tpu.memory_space<vmem>>, vector<8x4xbf16>
    %cst = arith.constant dense<0.000000e+00> : vector<8x384xf32>
    %5 = tpu.matmul %4, %3, %cst {dimension_numbers = #tpu.dot_dimension_numbers<[1], [0], [0], [1], [0, 0, 1, 1], [], []>} : vector<8x4xbf16>, vector<4x384xbf16>, vector<8x384xf32> -> vector<8x384xf32>
    %c0_5 = arith.constant 0 : index
    %c0_6 = arith.constant 0 : index
    %6 = vector.load %arg5[%c0_5, %c0_6] : memref<8x1xf32, #tpu.memory_space<vmem>>, vector<8x1xf32>
    %7 = vector.broadcast %6 : vector<8x1xf32> to vector<8x384xf32>
    %8 = arith.addf %5, %7 : vector<8x384xf32>
    %c0_7 = arith.constant 0 : index
    %c0_8 = arith.constant 0 : index
    %9 = vector.load %arg1[%c0_7, %c0_8] : memref<8x384xf32, #tpu.memory_space<vmem>>, vector<8x384xf32>
    %10 = arith.negf %8 : vector<8x384xf32>
    %11 = math.exp %10 : vector<8x384xf32>
    %cst_9 = arith.constant 1.000000e+00 : f32
    %12 = vector.broadcast %cst_9 : f32 to vector<8x384xf32>
    %13 = arith.addf %12, %11 : vector<8x384xf32>
    %14 = arith.divf %12, %13 : vector<8x384xf32>
    %15 = arith.mulf %9, %14 : vector<8x384xf32>
    %c0_10 = arith.constant 0 : index
    %c0_11 = arith.constant 0 : index
    %16 = vector.load %arg6[%c0_10, %c0_11] : memref<8x384xf32, #tpu.memory_space<vmem>>, vector<8x384xf32>
    tpu.vector_store %arg6[%c0_10, %c0_11], %15 {strides = array<i32>} : memref<8x384xf32, #tpu.memory_space<vmem>>, vector<8x384xf32>,
    return
  }
  func.func @transform_0(%arg0: i32) -> (i32, i32) {
    %c0_i32 = arith.constant 0 : i32
    %c0_i32_0 = arith.constant 0 : i32
    return %c0_i32, %arg0 : i32, i32
  }
  func.func @transform_1(%arg0: i32) -> (i32, i32) {
    %c0_i32 = arith.constant 0 : i32
    %c0_i32_0 = arith.constant 0 : i32
    return %c0_i32, %arg0 : i32, i32
  }
  func.func @transform_2(%arg0: i32) -> (i32, i32) {
    %c0_i32 = arith.constant 0 : i32
    %c0_i32_0 = arith.constant 0 : i32
    return %c0_i32, %arg0 : i32, i32
  }
  func.func @transform_3(%arg0: i32) -> (i32, i32) {
    %c0_i32 = arith.constant 0 : i32
    %c0_i32_0 = arith.constant 0 : i32
    %c0_i32_1 = arith.constant 0 : i32
    return %c0_i32, %c0_i32_0 : i32, i32
  }
  func.func @transform_4(%arg0: i32) -> (i32, i32) {
    %c0_i32 = arith.constant 0 : i32
    %c0_i32_0 = arith.constant 0 : i32
    %c0_i32_1 = arith.constant 0 : i32
    return %c0_i32, %c0_i32_0 : i32, i32
  }
  func.func @transform_5(%arg0: i32) -> (i32, i32) {
    %c0_i32 = arith.constant 0 : i32
    %c0_i32_0 = arith.constant 0 : i32
    return %c0_i32, %arg0 : i32, i32
  }
}

</mosaic_0001>

<llo_original>
// kernel: esa_block.7
$region0: #{esa_block.7}
  #allocation0 [shape = 'u32[]', space=smem, size = 0x4, offset = 0x4, fixed_abs, tag = 'smem constant byte address 0x4 - core index']
  #allocation1 [shape = 'u32[72,128]{1,0:T(1,128)}', space=vmem, size = 0x9000, scoped, tag = 'internal scratch']
  %s0 = inlined_call_operand.vmem [shape: f32[8,1152], index: 0, kind: input, shape index: {}]
  %s1 = inlined_call_operand.vmem [shape: bf16[4,8], index: 1, kind: input, shape index: {}]
  %s2 = inlined_call_operand.vmem [shape: f32[4,1], index: 2, kind: input, shape index: {}]
  %s3 = inlined_call_operand.vmem [shape: bf16[4,4], index: 3, kind: input, shape index: {}]
  %s4 = inlined_call_operand.vmem [shape: f32[4,1], index: 4, kind: input, shape index: {}]
  %s5 = inlined_call_operand.vmem [shape: f32[4,1152], index: 5, kind: output, shape index: {0}]
  %s6 = inlined_call_operand.vmem [shape: f32[4,1152], index: 6, kind: output, shape index: {1}]
  %7 = xla_tuple %s5, %s6
  %s8 = sld [smem:[#allocation0]]
  $region61: #{esa_block.7} parent=0
    _
  %s10 = ssub.s32 1, %s8
  %s11 = scalar_select 0, %s10, %s8
  loop: start=0, step=1, limit=5
  $region2: #{esa_block.7} parent=0 // loop_pre_header
    _
  $region3: #{esa_block.7} parent=0 // loop_header
    %s13 = sphi 0, %s17
    %p14 = scmp.ge.s32.totalorder %s13, 5
    %s23 = sphi 0, %s25
    %s26 = sphi 0, %s23
    %s27 = sphi 0, %s26
    %s43 = sphi 0, %s27
    %s47 = sphi 0, %s47
    %s49 = sphi 0, %s47
    %s50 = sphi 0, %s49
    %s64 = sphi 0, %s50
    %s68 = sphi 0, %s68
    %s70 = sphi 0, %s68
    %s71 = sphi 0, %s70
    %s85 = sphi 0, %s71
    %s89 = sphi 0, %s89
    %s91 = sphi 0, %s89
    %s92 = sphi 0, %s91
    %s106 = sphi 0, %s92
    %s110 = sphi 0, %s110
    %s112 = sphi 0, %s110
    %s113 = sphi 0, %s112
    %s127 = sphi 0, %s113
    %s133 = sphi 0, %s135
    %s136 = sphi 0, %s133
    %s137 = sphi 0, %s136
    %s153 = sphi 0, %s137
    %s159 = sphi 0, %s161
    %s162 = sphi 0, %s159
    %s163 = sphi 0, %s162
    %s179 = sphi 0, %s163
  $region4: #{esa_block.7} parent=0 // loop_header_branch
    %16 = sbr.rel (%p14) target = $region8
  $region5: #{esa_block.7} parent=0 // loop_body
    %s18 = ssub.s32 %s13, 1
    %s19 = ssub.s32 %s13, 2
    %s20 = sadd.s32 %s13, 1
    %s21 = ssub.s32 %s13, %s20
    %p22 = scmp.eq.s32.totalorder %s21, 0
    %s24 = sadd.s32 %s23, 1
    %s25 = scalar_select %p22, %s23, %s24
    %p28 = pneg %p22
    %p29 = scmp.eq.s32.totalorder %s13, 2
    %p30 = por %p28, %p29
    %p31 = scmp.ne.s32.totalorder %s23, %s26
    %p32 = scmp.eq.s32.totalorder %s13, 0
    %p33 = por %p31, %p32
    %p34 = scmp.ne.s32.totalorder %s23, %s26
    %p35 = scmp.eq.s32.totalorder %s18, 2
    %p36 = por %p34, %p35
    %p37 = scmp.ne.s32.totalorder %s26, %s27
    %p38 = scmp.eq.s32.totalorder %s18, 0
    %p39 = por %p37, %p38
    %p40 = scmp.ne.s32.totalorder %s26, %s27
    %p41 = scmp.eq.s32.totalorder %s19, 2
    %p42 = por %p40, %p41
    %p44 = scmp.ne.s32.totalorder %s27, %s43
    %p45 = scmp.eq.s32.totalorder %s19, 0
    %p46 = por %p44, %p45
    %s48 = sadd.s32 %s47, 1
    %p51 = scmp.eq.s32.totalorder %s13, 2
    %p52 = scmp.ne.s32.totalorder %s47, %s49
    %p53 = scmp.eq.s32.totalorder %s13, 0
    %p54 = por %p52, %p53
    %p55 = scmp.ne.s32.totalorder %s47, %s49
    %p56 = scmp.eq.s32.totalorder %s18, 2
    %p57 = por %p55, %p56
    %p58 = scmp.ne.s32.totalorder %s49, %s50
    %p59 = scmp.eq.s32.totalorder %s18, 0
    %p60 = por %p58, %p59
    %p61 = scmp.ne.s32.totalorder %s49, %s50
    %p62 = scmp.eq.s32.totalorder %s19, 2
    %p63 = por %p61, %p62
    %p65 = scmp.ne.s32.totalorder %s50, %s64
    %p66 = scmp.eq.s32.totalorder %s19, 0
    %p67 = por %p65, %p66
    %s69 = sadd.s32 %s68, 1
    %p72 = scmp.eq.s32.totalorder %s13, 2
    %p73 = scmp.ne.s32.totalorder %s68, %s70
    %p74 = scmp.eq.s32.totalorder %s13, 0
    %p75 = por %p73, %p74
    %p76 = scmp.ne.s32.totalorder %s68, %s70
    %p77 = scmp.eq.s32.totalorder %s18, 2
    %p78 = por %p76, %p77
    %p79 = scmp.ne.s32.totalorder %s70, %s71
    %p80 = scmp.eq.s32.totalorder %s18, 0
    %p81 = por %p79, %p80
    %p82 = scmp.ne.s32.totalorder %s70, %s71
    %p83 = scmp.eq.s32.totalorder %s19, 2
    %p84 = por %p82, %p83
    %p86 = scmp.ne.s32.totalorder %s71, %s85
    %p87 = scmp.eq.s32.totalorder %s19, 0
    %p88 = por %p86, %p87
    %s90 = sadd.s32 %s89, 1
    %p93 = scmp.eq.s32.totalorder %s13, 2
    %p94 = scmp.ne.s32.totalorder %s89, %s91
    %p95 = scmp.eq.s32.totalorder %s13, 0
    %p96 = por %p94, %p95
    %p97 = scmp.ne.s32.totalorder %s89, %s91
    %p98 = scmp.eq.s32.totalorder %s18, 2
    %p99 = por %p97, %p98
    %p100 = scmp.ne.s32.totalorder %s91, %s92
    %p101 = scmp.eq.s32.totalorder %s18, 0
    %p102 = por %p100, %p101
    %p103 = scmp.ne.s32.totalorder %s91, %s92
    %p104 = scmp.eq.s32.totalorder %s19, 2
    %p105 = por %p103, %p104
    %p107 = scmp.ne.s32.totalorder %s92, %s106
    %p108 = scmp.eq.s32.totalorder %s19, 0
    %p109 = por %p107, %p108
    %s111 = sadd.s32 %s110, 1
    %p114 = scmp.eq.s32.totalorder %s13, 2
    %p115 = scmp.ne.s32.totalorder %s110, %s112
    %p116 = scmp.eq.s32.totalorder %s13, 0
    %p117 = por %p115, %p116
    %p118 = scmp.ne.s32.totalorder %s110, %s112
    %p119 = scmp.eq.s32.totalorder %s18, 2
    %p120 = por %p118, %p119
    %p121 = scmp.ne.s32.totalorder %s112, %s113
    %p122 = scmp.eq.s32.totalorder %s18, 0
    %p123 = por %p121, %p122
    %p124 = scmp.ne.s32.totalorder %s112, %s113
    %p125 = scmp.eq.s32.totalorder %s19, 2
    %p126 = por %p124, %p125
    %p128 = scmp.ne.s32.totalorder %s113, %s127
    %p129 = scmp.eq.s32.totalorder %s19, 0
    %p130 = por %p128, %p129
    %s131 = ssub.s32 %s13, %s20
    %p132 = scmp.eq.s32.totalorder %s131, 0
    %s134 = sadd.s32 %s133, 1
    %s135 = scalar_select %p132, %s133, %s134
    %p138 = pneg %p132
    %p139 = scmp.eq.s32.totalorder %s13, 2
    %p140 = por %p138, %p139
    %p141 = scmp.ne.s32.totalorder %s133, %s136
    %p142 = scmp.eq.s32.totalorder %s13, 0
    %p143 = por %p141, %p142
    %p144 = scmp.ne.s32.totalorder %s133, %s136
    %p145 = scmp.eq.s32.totalorder %s18, 2
    %p146 = por %p144, %p145
    %p147 = scmp.ne.s32.totalorder %s136, %s137
    %p148 = scmp.eq.s32.totalorder %s18, 0
    %p149 = por %p147, %p148
    %p150 = scmp.ne.s32.totalorder %s136, %s137
    %p151 = scmp.eq.s32.totalorder %s19, 2
    %p152 = por %p150, %p151
    %p154 = scmp.ne.s32.totalorder %s137, %s153
    %p155 = scmp.eq.s32.totalorder %s19, 0
    %p156 = por %p154, %p155
    %s157 = ssub.s32 %s13, %s20
    %p158 = scmp.eq.s32.totalorder %s157, 0
    %s160 = sadd.s32 %s159, 1
    %s161 = scalar_select %p158, %s159, %s160
    %p164 = pneg %p158
    %p165 = scmp.eq.s32.totalorder %s13, 2
    %p166 = por %p164, %p165
    %p167 = scmp.ne.s32.totalorder %s159, %s162
    %p168 = scmp.eq.s32.totalorder %s13, 0
    %p169 = por %p167, %p168
    %p170 = scmp.ne.s32.totalorder %s159, %s162
    %p171 = scmp.eq.s32.totalorder %s18, 2
    %p172 = por %p170, %p171
    %p173 = scmp.ne.s32.totalorder %s162, %s163
    %p174 = scmp.eq.s32.totalorder %s18, 0
    %p175 = por %p173, %p174
    %p176 = scmp.ne.s32.totalorder %s162, %s163
    %p177 = scmp.eq.s32.totalorder %s19, 2
    %p178 = por %p176, %p177
    %p180 = scmp.ne.s32.totalorder %s163, %s179
    %p181 = scmp.eq.s32.totalorder %s19, 0
    %p182 = por %p180, %p181
    %p183 = scmp.le.s32.totalorder 1, %s13
    %p184 = scmp.lt.s32.totalorder %s13, 4
    %p185 = pnand %p183, %p184
    %p186 = pneg %p185
    // Predicated region
    $region9: #{esa_block.7} parent=5 // pred_check
      _
    $region10: #{esa_block.7} parent=5 // pred_check_branch
      %188 = sbr.rel (%p185) target = $region12
    $region11: #{esa_block.7} parent=5 // pred_region
      %s189 = ssub.s32 %s13, 1
      // Predicated region
      $region13: #{esa_block.7} parent=11 // pred_check
        %p190 = pneg %p60
      $region14: #{esa_block.7} parent=11 // pred_check_branch
        %192 = sbr.rel (%p190) target = $region16
      $region15: #{esa_block.7} parent=11 // pred_region
        _
      $region16: #{esa_block.7} parent=11 // pred_fallthru
        _
      // Predicated region
      $region17: #{esa_block.7} parent=11 // pred_check
        %p193 = pneg %p81
      $region18: #{esa_block.7} parent=11 // pred_check_branch
        %195 = sbr.rel (%p193) target = $region20
      $region19: #{esa_block.7} parent=11 // pred_region
        _
      $region20: #{esa_block.7} parent=11 // pred_fallthru
        _
      // Predicated region
      $region21: #{esa_block.7} parent=11 // pred_check
        %p196 = pneg %p102
      $region22: #{esa_block.7} parent=11 // pred_check_branch
        %198 = sbr.rel (%p196) target = $region24
      $region23: #{esa_block.7} parent=11 // pred_region
        _
      $region24: #{esa_block.7} parent=11 // pred_fallthru
        _
      // Predicated region
      $region25: #{esa_block.7} parent=11 // pred_check
        %p199 = pneg %p123
      $region26: #{esa_block.7} parent=11 // pred_check_branch
        %201 = sbr.rel (%p199) target = $region28
      $region27: #{esa_block.7} parent=11 // pred_region
        _
      $region28: #{esa_block.7} parent=11 // pred_fallthru
        _
    $region12: #{esa_block.7} parent=5 // pred_fallthru
      _
    %p202 = scmp.lt.s32.totalorder %s13, 3
    // Predicated region
    $region29: #{esa_block.7} parent=5 // pred_check
      %p203 = pneg %p202
    $region30: #{esa_block.7} parent=5 // pred_check_branch
      %205 = sbr.rel (%p203) target = $region32
    $region31: #{esa_block.7} parent=5 // pred_region
      // Predicated region
      $region33: #{esa_block.7} parent=31 // pred_check
        %p206 = pneg %p33
      $region34: #{esa_block.7} parent=31 // pred_check_branch
        %208 = sbr.rel (%p206) target = $region36
      $region35: #{esa_block.7} parent=31 // pred_region
        %s209 = smul.u32 3, %s13
        %p210 = scmp.lt.s32.totalorder %s209, 8
        %s211 = scalar_select %p210, %s209, 8
        %s212 = smul.addr %s211, 8
        %s213 = scalar_lea.vmem %s0, %s212
        %s214 = smul.u32 3, %s13
      $region36: #{esa_block.7} parent=31 // pred_fallthru
        _
    $region32: #{esa_block.7} parent=5 // pred_fallthru
      _
    %p215 = scmp.le.s32.totalorder 1, %s13
    %p216 = scmp.lt.s32.totalorder %s13, 4
    %p217 = pnand %p215, %p216
    %p218 = pneg %p217
    // Predicated region
    $region37: #{esa_block.7} parent=5 // pred_check
      _
    $region38: #{esa_block.7} parent=5 // pred_check_branch
      %220 = sbr.rel (%p217) target = $region40
    $region39: #{esa_block.7} parent=5 // pred_region
      %s221 = ssub.s32 %s13, 1
      %s222 = smul.u32 3, %s18
      %p223 = scmp.lt.s32.totalorder %s222, 8
      %s224 = scalar_select %p223, %s222, 8
      %s225 = smul.addr %s224, 8
      %s226 = scalar_lea.vmem %s0, %s225
      %p227 = pneg %p39
      %p228 = pneg %p36
      %p229 = pneg %p60
      %p230 = pneg %p57
      %p231 = pneg %p81
      %p232 = pneg %p78
      %p233 = pneg %p102
      %p234 = pneg %p99
      %p235 = pneg %p123
      %p236 = pneg %p120
      %p237 = pneg %p149
      %p238 = pneg %p146
      %s239 = smul.u32 3, %s18
      %p240 = scmp.lt.s32.totalorder %s239, 8
      %s241 = scalar_select %p240, %s239, 8
      %s242 = smul.addr %s241, 4
      %s243 = scalar_lea.vmem %s5, %s242
      %p244 = pneg %p175
      %p245 = pneg %p172
      %s246 = smul.u32 3, %s18
      %p247 = scmp.lt.s32.totalorder %s246, 8
      %s248 = scalar_select %p247, %s246, 8
      %s249 = smul.addr %s248, 4
      %s250 = scalar_lea.vmem %s6, %s249
      %s251 = smul.u32 3, %s18
      %p252 = scmp.lt.s32.totalorder %s251, 8
      %s253 = scalar_select %p252, %s251, 8
      %s254 = smul.addr %s253, 8
      %s255 = scalar_lea.vmem %s0, %s254
      %s256 = smul.u32 3, %s18
      %s257 = smul.u32 3, %s18
      %p258 = scmp.lt.s32.totalorder %s257, 8
      %s259 = scalar_select %p258, %s257, 8
      %s260 = smul.addr %s259, 4
      %s261 = scalar_lea.vmem %s5, %s260
      %s262 = smul.u32 3, %s18
      %s263 = smul.u32 3, %s18
      %p264 = scmp.lt.s32.totalorder %s263, 8
      %s265 = scalar_select %p264, %s263, 8
      %s266 = smul.addr %s265, 4
      %s267 = scalar_lea.vmem %s6, %s266
      %s268 = smul.u32 3, %s18
      %v270 = vld [vmem:[%s255] sm:$0xff]
      %v271 = vld [vmem:[%s255 + $0x8] sm:$0xff]
      %v272 = vld [vmem:[%s255 + $0x10] sm:$0xff]
      %v273 = vpack.c.bf16 %v270, %v270
      %v274 = vpack.c.bf16 %v271, %v271
      %v275 = vpack.c.bf16 %v272, %v272
      %v276 = vld [vmem:[%s1] sm:$0x3]
      %v277 = vld [vmem:[%s2] sm:$0xf]
      %279 = vset.pattern.permute.xlu0 0
      %280 = vperm.xlu0 %279, %v277
      %v281 = vpop.permute.xlu0 %280
      %vm283 = vcmask 64512
      %v285 = vsel %vm283, %v276, 0
      %vm287 = vcmask 1043456
      %v289 = vsel %vm287, %v273, 0
      %v292 = vsel %vm287, %v274, 0
      %v295 = vsel %vm287, %v275, 0
      %297 = vmatpush.bf16.msra.mxu0 0
      %298 = vmatpush.bf16.msra.mxu0 0
      %299 = vmatpush.bf16.msra.mxu0 0
      %300 = vmatpush.bf16.msra.mxu0 0
      %301 = vmatpush.bf16.msra.mxu0 0
      %302 = vmatpush.bf16.msra.mxu0 0
      %303 = vmatpush.bf16.msra.mxu0 0
      %304 = vmatpush.bf16.msra.mxu0 %v289
      %305 = vmatmul.bf16.gmra.mxu0 %v285
      %v306 = vpop.f32.mrf.mxu0
      %v307 = vadd.f32 %v281, %v306
      %v308 = vpop.f32.mrf.mxu0
      %309 = vdwg.mxu0
      %310 = vmatpush.bf16.msra.mxu0 0
      %311 = vmatpush.bf16.msra.mxu0 0
      %312 = vmatpush.bf16.msra.mxu0 0
      %313 = vmatpush.bf16.msra.mxu0 0
      %314 = vmatpush.bf16.msra.mxu0 0
      %315 = vmatpush.bf16.msra.mxu0 0
      %316 = vmatpush.bf16.msra.mxu0 0
      %317 = vmatpush.bf16.msra.mxu0 %v292
      %318 = vmatmul.bf16.gmra.mxu0 %v285
      %v319 = vpop.f32.mrf.mxu0
      %v320 = vadd.f32 %v281, %v319
      %v321 = vpop.f32.mrf.mxu0
      %322 = vdwg.mxu0
      %323 = vmatpush.bf16.msra.mxu0 0
      %324 = vmatpush.bf16.msra.mxu0 0
      %325 = vmatpush.bf16.msra.mxu0 0
      %326 = vmatpush.bf16.msra.mxu0 0
      %327 = vmatpush.bf16.msra.mxu0 0
      %328 = vmatpush.bf16.msra.mxu0 0
      %329 = vmatpush.bf16.msra.mxu0 0
      %330 = vmatpush.bf16.msra.mxu0 %v295
      %331 = vmatmul.bf16.gmra.mxu0 %v285
      %v332 = vpop.f32.mrf.mxu0
      %v333 = vadd.f32 %v281, %v332
      %v334 = vpop.f32.mrf.mxu0
      %335 = vdwg.mxu0
      %v338 = vrot.slane %v320, 4
      %v339 = vsel %vm287, %v307, %v338
      %341 = vst [vmem:[%s261] sm:$0xff] %v339
      %342 = vst [vmem:[%s261 + $0x8] sm:$0xf] %v333
      %v343 = vld [vmem:[%s3] sm:$0x3]
      %v344 = vpack.c.bf16 %v307, %v307
      %v345 = vpack.c.bf16 %v320, %v320
      %v346 = vpack.c.bf16 %v333, %v333
      %v347 = vld [vmem:[%s4] sm:$0xf]
      %349 = vset.pattern.permute.xlu0 0
      %350 = vperm.xlu0 %349, %v347
      %v351 = vpop.permute.xlu0 %350
      %vm353 = vcmask 31744
      %v355 = vsel %vm353, %v343, 0
      %vm357 = vcmask 1041408
      %v359 = vsel %vm357, %v344, 0
      %v362 = vsel %vm357, %v345, 0
      %v365 = vsel %vm357, %v346, 0
      %367 = vmatpush.bf16.msra.mxu0 0
      %368 = vmatpush.bf16.msra.mxu0 0
      %369 = vmatpush.bf16.msra.mxu0 0
      %370 = vmatpush.bf16.msra.mxu0 0
      %371 = vmatpush.bf16.msra.mxu0 0
      %372 = vmatpush.bf16.msra.mxu0 0
      %373 = vmatpush.bf16.msra.mxu0 0
      %374 = vmatpush.bf16.msra.mxu0 %v359
      %375 = vmatmul.bf16.gmra.mxu0 %v355
      %v376 = vpop.f32.mrf.mxu0
      %v377 = vadd.f32 %v351, %v376
      %v378 = vpop.f32.mrf.mxu0
      %379 = vdwg.mxu0
      %380 = vmatpush.bf16.msra.mxu0 0
      %381 = vmatpush.bf16.msra.mxu0 0
      %382 = vmatpush.bf16.msra.mxu0 0
      %383 = vmatpush.bf16.msra.mxu0 0
      %384 = vmatpush.bf16.msra.mxu0 0
      %385 = vmatpush.bf16.msra.mxu0 0
      %386 = vmatpush.bf16.msra.mxu0 0
      %387 = vmatpush.bf16.msra.mxu0 %v362
      %388 = vmatmul.bf16.gmra.mxu0 %v355
      %v389 = vpop.f32.mrf.mxu0
      %v390 = vadd.f32 %v351, %v389
      %v391 = vpop.f32.mrf.mxu0
      %392 = vdwg.mxu0
      %393 = vmatpush.bf16.msra.mxu0 0
      %394 = vmatpush.bf16.msra.mxu0 0
      %395 = vmatpush.bf16.msra.mxu0 0
      %396 = vmatpush.bf16.msra.mxu0 0
      %397 = vmatpush.bf16.msra.mxu0 0
      %398 = vmatpush.bf16.msra.mxu0 0
      %399 = vmatpush.bf16.msra.mxu0 0
      %400 = vmatpush.bf16.msra.mxu0 %v365
      %401 = vmatmul.bf16.gmra.mxu0 %v355
      %v402 = vpop.f32.mrf.mxu0
      %v403 = vadd.f32 %v351, %v402
      %v404 = vpop.f32.mrf.mxu0
      %405 = vdwg.mxu0
      %v408 = vrot.slane %v390, 4
      %v409 = vsel %vm287, %v377, %v408
      %411 = vst [vmem:[%s267] sm:$0xff] %v409
      %412 = vst [vmem:[%s267 + $0x8] sm:$0xf] %v403
      %s413 = smul.u32 3, %s18
      %p414 = scmp.lt.s32.totalorder %s413, 8
      %s415 = scalar_select %p414, %s413, 8
      %s416 = smul.addr %s415, 4
      %s417 = scalar_lea.vmem %s5, %s416
      %s418 = smul.u32 3, %s18
      %p419 = scmp.lt.s32.totalorder %s418, 8
      %s420 = scalar_select %p419, %s418, 8
      %s421 = smul.addr %s420, 4
      %s422 = scalar_lea.vmem %s6, %s421
      // Predicated region
      $region41: #{esa_block.7} parent=39 // pred_check
        %p423 = pneg %p146
      $region42: #{esa_block.7} parent=39 // pred_check_branch
        %425 = sbr.rel (%p423) target = $region44
      $region43: #{esa_block.7} parent=39 // pred_region
        %s426 = smul.u32 3, %s18
      $region44: #{esa_block.7} parent=39 // pred_fallthru
        _
      // Predicated region
      $region45: #{esa_block.7} parent=39 // pred_check
        %p427 = pneg %p172
      $region46: #{esa_block.7} parent=39 // pred_check_branch
        %429 = sbr.rel (%p427) target = $region48
      $region47: #{esa_block.7} parent=39 // pred_region
        %s430 = smul.u32 3, %s18
      $region48: #{esa_block.7} parent=39 // pred_fallthru
        _
    $region40: #{esa_block.7} parent=5 // pred_fallthru
      _
    %p431 = scmp.le.s32.totalorder 2, %s13
    // Predicated region
    $region49: #{esa_block.7} parent=5 // pred_check
      %p432 = pneg %p431
    $region50: #{esa_block.7} parent=5 // pred_check_branch
      %434 = sbr.rel (%p432) target = $region52
    $region51: #{esa_block.7} parent=5 // pred_region
      %s435 = ssub.s32 %s13, 2
      // Predicated region
      $region53: #{esa_block.7} parent=51 // pred_check
        %p436 = pneg %p152
      $region54: #{esa_block.7} parent=51 // pred_check_branch
        %438 = sbr.rel (%p436) target = $region56
      $region55: #{esa_block.7} parent=51 // pred_region
        %s439 = smul.u32 3, %s19
        %p440 = scmp.lt.s32.totalorder %s439, 8
        %s441 = scalar_select %p440, %s439, 8
        %s442 = smul.addr %s441, 4
        %s443 = scalar_lea.vmem %s5, %s442
      $region56: #{esa_block.7} parent=51 // pred_fallthru
        _
      // Predicated region
      $region57: #{esa_block.7} parent=51 // pred_check
        %p444 = pneg %p178
      $region58: #{esa_block.7} parent=51 // pred_check_branch
        %446 = sbr.rel (%p444) target = $region60
      $region59: #{esa_block.7} parent=51 // pred_region
        %s447 = smul.u32 3, %s19
        %p448 = scmp.lt.s32.totalorder %s447, 8
        %s449 = scalar_select %p448, %s447, 8
        %s450 = smul.addr %s449, 4
        %s451 = scalar_lea.vmem %s6, %s450
      $region60: #{esa_block.7} parent=51 // pred_fallthru
        _
    $region52: #{esa_block.7} parent=5 // pred_fallthru
      _
  $region6: #{esa_block.7} parent=0 // loop_footer
    %s17 = sadd.s32 1, %s13
  $region7: #{esa_block.7} parent=0 // loop_footer_branch
    %12 = sbr.rel target = $region3
  $region8: #{esa_block.7} parent=0 // loop_exit
    _

// kernel: esa_block.8
$region0: #{esa_block.8}
  #allocation0 [shape = 'u32[]', space=smem, size = 0x4, offset = 0x4, fixed_abs, tag = 'smem constant byte address 0x4 - core index']
  #allocation1 [shape = 'u32[72,128]{1,0:T(1,128)}', space=vmem, size = 0x9000, scoped, tag = 'internal scratch']
  %s0 = inlined_call_operand.vmem [shape: bf16[4,36], index: 0, kind: input, shape index: {}]
  %s1 = inlined_call_operand.vmem [shape: f32[36,256], index: 1, kind: input, shape index: {}]
  %s2 = inlined_call_operand.vmem [shape: f32[4,1], index: 2, kind: input, shape index: {}]
  %s3 = inlined_call_operand.vmem [shape: f32[4,256], index: 3, kind: output, shape index: {}]
  %s4 = sld [smem:[#allocation0]]
  $region22: #{esa_block.8} parent=0
    _
  %s6 = ssub.s32 1, %s4
  %s7 = scalar_select 0, %s6, %s4
  // Predicated region
  $region2: #{esa_block.8} parent=0 // pred_check
    _
  $region3: #{esa_block.8} parent=0 // pred_check_branch
    %9 = sbr.rel (0) target = $region5
  $region4: #{esa_block.8} parent=0 // pred_region
    _
  $region5: #{esa_block.8} parent=0 // pred_fallthru
    _
  // Predicated region
  $region6: #{esa_block.8} parent=0 // pred_check
    _
  $region7: #{esa_block.8} parent=0 // pred_check_branch
    %11 = sbr.rel (0) target = $region9
  $region8: #{esa_block.8} parent=0 // pred_region
    _
  $region9: #{esa_block.8} parent=0 // pred_fallthru
    _
  // Predicated region
  $region10: #{esa_block.8} parent=0 // pred_check
    _
  $region11: #{esa_block.8} parent=0 // pred_check_branch
    %13 = sbr.rel (0) target = $region13
  $region12: #{esa_block.8} parent=0 // pred_region
    _
  $region13: #{esa_block.8} parent=0 // pred_fallthru
    _
  %v15 = vld [vmem:[%s0] sm:$0x3]
  %v16 = vld [vmem:[%s1] sm:$0xff]
  %v17 = vld [vmem:[%s1 + $0x8] sm:$0xff]
  %v18 = vld [vmem:[%s1 + $0x10] sm:$0xff]
  %v19 = vld [vmem:[%s1 + $0x18] sm:$0xff]
  %v20 = vld [vmem:[%s1 + $0x20] sm:$0xff]
  %v21 = vld [vmem:[%s1 + $0x28] sm:$0xff]
  %v22 = vld [vmem:[%s1 + $0x30] sm:$0xff]
  %v23 = vld [vmem:[%s1 + $0x38] sm:$0xff]
  %v24 = vld [vmem:[%s1 + $0x40] sm:$0xf]
  %v25 = vld [vmem:[%s1 + $0x48] sm:$0xf]
  %v26 = vpack.c.bf16 %v18, %v16
  %v27 = vpack.c.bf16 %v19, %v17
  %v28 = vpack.c.bf16 %v22, %v20
  %v29 = vpack.c.bf16 %v23, %v21
  %v30 = vpack.c.bf16 %v24, %v24
  %v31 = vpack.c.bf16 %v25, %v25
  %v32 = vld [vmem:[%s2] sm:$0xf]
  %34 = vset.pattern.permute.xlu0 0
  %35 = vperm.xlu0 %34, %v32
  %v36 = vpop.permute.xlu0 %35
  %vm38 = vcmask 293888
  %v40 = vsel %vm38, %v15, 0
  %vm42 = vcmask 1041408
  %v44 = vsel %vm42, %v30, 0
  %v47 = vsel %vm42, %v31, 0
  %49 = vmatpush.bf16.msra.mxu0 0
  %50 = vmatpush.bf16.msra.mxu0 0
  %51 = vmatpush.bf16.msra.mxu0 0
  %52 = vmatpush.bf16.msra.mxu0 0
  %53 = vmatpush.bf16.msra.mxu0 0
  %54 = vmatpush.bf16.msra.mxu0 %v44
  %55 = vmatpush.bf16.msra.mxu0 %v28
  %56 = vmatpush.bf16.msra.mxu0 %v26
  %57 = vmatmul.bf16.gmra.mxu0 %v40
  %v58 = vpop.f32.mrf.mxu0
  %v59 = vadd.f32 %v36, %v58
  %v60 = vpop.f32.mrf.mxu0
  %61 = vdwg.mxu0
  %62 = vmatpush.bf16.msra.mxu0 0
  %63 = vmatpush.bf16.msra.mxu0 0
  %64 = vmatpush.bf16.msra.mxu0 0
  %65 = vmatpush.bf16.msra.mxu0 0
  %66 = vmatpush.bf16.msra.mxu0 0
  %67 = vmatpush.bf16.msra.mxu0 %v47
  %68 = vmatpush.bf16.msra.mxu0 %v29
  %69 = vmatpush.bf16.msra.mxu0 %v27
  %70 = vmatmul.bf16.gmra.mxu0 %v40
  %v71 = vpop.f32.mrf.mxu0
  %v72 = vadd.f32 %v36, %v71
  %v73 = vpop.f32.mrf.mxu0
  %74 = vdwg.mxu0
  %v77 = vrot.slane %v72, 4
  %vm78 = vcmask 1043456
  %v79 = vsel %vm78, %v59, %v77
  %81 = vst [vmem:[%s3] sm:$0xff] %v79
  // Predicated region
  $region14: #{esa_block.8} parent=0 // pred_check
    _
  $region15: #{esa_block.8} parent=0 // pred_check_branch
    %83 = sbr.rel (0) target = $region17
  $region16: #{esa_block.8} parent=0 // pred_region
    _
  $region17: #{esa_block.8} parent=0 // pred_fallthru
    _
  // Predicated region
  $region18: #{esa_block.8} parent=0 // pred_check
    _
  $region19: #{esa_block.8} parent=0 // pred_check_branch
    %85 = sbr.rel (0) target = $region21
  $region20: #{esa_block.8} parent=0 // pred_region
    _
  $region21: #{esa_block.8} parent=0 // pred_fallthru
    _

// kernel: esa_block.9
$region0: #{esa_block.9}
  #allocation0 [shape = 'u32[]', space=smem, size = 0x4, offset = 0x4, fixed_abs, tag = 'smem constant byte address 0x4 - core index']
  #allocation1 [shape = 'u32[72,128]{1,0:T(1,128)}', space=vmem, size = 0x9000, scoped, tag = 'internal scratch']
  %s0 = inlined_call_operand.vmem [shape: f32[49,4,128], index: 0, kind: input, shape index: {}]
  %s1 = inlined_call_operand.vmem [shape: f32[4,128], index: 1, kind: output, shape index: {}]
  %s2 = sld [smem:[#allocation0]]
  $region14: #{esa_block.9} parent=0
    _
  %s4 = ssub.s32 1, %s2
  %s5 = scalar_select 0, %s4, %s2
  // Predicated region
  $region2: #{esa_block.9} parent=0 // pred_check
    _
  $region3: #{esa_block.9} parent=0 // pred_check_branch
    %7 = sbr.rel (0) target = $region5
  $region4: #{esa_block.9} parent=0 // pred_region
    _
  $region5: #{esa_block.9} parent=0 // pred_fallthru
    _
  %v8 = vld [vmem:[%s0] sm:$0xf]
  %v9 = vld [vmem:[%s0 + $0x4] sm:$0xf]
  %v10 = vld [vmem:[%s0 + $0x8] sm:$0xf]
  %v11 = vld [vmem:[%s0 + $0xc] sm:$0xf]
  %v12 = vld [vmem:[%s0 + $0x10] sm:$0xf]
  %v13 = vld [vmem:[%s0 + $0x14] sm:$0xf]
  %v14 = vld [vmem:[%s0 + $0x18] sm:$0xf]
  %v15 = vld [vmem:[%s0 + $0x1c] sm:$0xf]
  %v16 = vld [vmem:[%s0 + $0x20] sm:$0xf]
  %v17 = vld [vmem:[%s0 + $0x24] sm:$0xf]
  %v18 = vld [vmem:[%s0 + $0x28] sm:$0xf]
  %v19 = vld [vmem:[%s0 + $0x2c] sm:$0xf]
  %v20 = vld [vmem:[%s0 + $0x30] sm:$0xf]
  %v21 = vld [vmem:[%s0 + $0x34] sm:$0xf]
  %v22 = vld [vmem:[%s0 + $0x38] sm:$0xf]
  %v23 = vld [vmem:[%s0 + $0x3c] sm:$0xf]
  %v24 = vld [vmem:[%s0 + $0x40] sm:$0xf]
  %v25 = vld [vmem:[%s0 + $0x44] sm:$0xf]
  %v26 = vld [vmem:[%s0 + $0x48] sm:$0xf]
  %v27 = vld [vmem:[%s0 + $0x4c] sm:$0xf]
  %v28 = vld [vmem:[%s0 + $0x50] sm:$0xf]
  %v29 = vld [vmem:[%s0 + $0x54] sm:$0xf]
  %v30 = vld [vmem:[%s0 + $0x58] sm:$0xf]
  %v31 = vld [vmem:[%s0 + $0x5c] sm:$0xf]
  %v32 = vld [vmem:[%s0 + $0x60] sm:$0xf]
  %v33 = vld [vmem:[%s0 + $0x64] sm:$0xf]
  %v34 = vld [vmem:[%s0 + $0x68] sm:$0xf]
  %v35 = vld [vmem:[%s0 + $0x6c] sm:$0xf]
  %v36 = vld [vmem:[%s0 + $0x70] sm:$0xf]
  %v37 = vld [vmem:[%s0 + $0x74] sm:$0xf]
  %v38 = vld [vmem:[%s0 + $0x78] sm:$0xf]
  %v39 = vld [vmem:[%s0 + $0x7c] sm:$0xf]
  %v40 = vld [vmem:[%s0 + $0x80] sm:$0xf]
  %v41 = vld [vmem:[%s0 + $0x84] sm:$0xf]
  %v42 = vld [vmem:[%s0 + $0x88] sm:$0xf]
  %v43 = vld [vmem:[%s0 + $0x8c] sm:$0xf]
  %v44 = vld [vmem:[%s0 + $0x90] sm:$0xf]
  %v45 = vld [vmem:[%s0 + $0x94] sm:$0xf]
  %v46 = vld [vmem:[%s0 + $0x98] sm:$0xf]
  %v47 = vld [vmem:[%s0 + $0x9c] sm:$0xf]
  %v48 = vld [vmem:[%s0 + $0xa0] sm:$0xf]
  %v49 = vld [vmem:[%s0 + $0xa4] sm:$0xf]
  %v50 = vld [vmem:[%s0 + $0xa8] sm:$0xf]
  %v51 = vld [vmem:[%s0 + $0xac] sm:$0xf]
  %v52 = vld [vmem:[%s0 + $0xb0] sm:$0xf]
  %v53 = vld [vmem:[%s0 + $0xb4] sm:$0xf]
  %v54 = vld [vmem:[%s0 + $0xb8] sm:$0xf]
  %v55 = vld [vmem:[%s0 + $0xbc] sm:$0xf]
  %v56 = vld [vmem:[%s0 + $0xc0] sm:$0xf]
  %vm57 = vcmask 1043456
  %v58 = vsel %vm57, %v8, -inf
  %v59 = vsel %vm57, %v9, -inf
  %v60 = vsel %vm57, %v10, -inf
  %v61 = vsel %vm57, %v11, -inf
  %v62 = vsel %vm57, %v12, -inf
  %v63 = vmax.f32 %v58, %v62
  %v64 = vsel %vm57, %v13, -inf
  %v65 = vmax.f32 %v59, %v64
  %v66 = vsel %vm57, %v14, -inf
  %v67 = vmax.f32 %v60, %v66
  %v68 = vsel %vm57, %v15, -inf
  %v69 = vmax.f32 %v61, %v68
  %v70 = vsel %vm57, %v16, -inf
  %v71 = vmax.f32 %v63, %v70
  %v72 = vsel %vm57, %v17, -inf
  %v73 = vmax.f32 %v65, %v72
  %v74 = vsel %vm57, %v18, -inf
  %v75 = vmax.f32 %v67, %v74
  %v76 = vsel %vm57, %v19, -inf
  %v77 = vmax.f32 %v69, %v76
  %v78 = vsel %vm57, %v20, -inf
  %v79 = vmax.f32 %v71, %v78
  %v80 = vsel %vm57, %v21, -inf
  %v81 = vmax.f32 %v73, %v80
  %v82 = vsel %vm57, %v22, -inf
  %v83 = vmax.f32 %v75, %v82
  %v84 = vsel %vm57, %v23, -inf
  %v85 = vmax.f32 %v77, %v84
  %v86 = vsel %vm57, %v24, -inf
  %v87 = vmax.f32 %v79, %v86
  %v88 = vsel %vm57, %v25, -inf
  %v89 = vmax.f32 %v81, %v88
  %v90 = vsel %vm57, %v26, -inf
  %v91 = vmax.f32 %v83, %v90
  %v92 = vsel %vm57, %v27, -inf
  %v93 = vmax.f32 %v85, %v92
  %v94 = vsel %vm57, %v28, -inf
  %v95 = vmax.f32 %v87, %v94
  %v96 = vsel %vm57, %v29, -inf
  %v97 = vmax.f32 %v89, %v96
  %v98 = vsel %vm57, %v30, -inf
  %v99 = vmax.f32 %v91, %v98
  %v100 = vsel %vm57, %v31, -inf
  %v101 = vmax.f32 %v93, %v100
  %v102 = vsel %vm57, %v32, -inf
  %v103 = vmax.f32 %v95, %v102
  %v104 = vsel %vm57, %v33, -inf
  %v105 = vmax.f32 %v97, %v104
  %v106 = vsel %vm57, %v34, -inf
  %v107 = vmax.f32 %v99, %v106
  %v108 = vsel %vm57, %v35, -inf
  %v109 = vmax.f32 %v101, %v108
  %v110 = vsel %vm57, %v36, -inf
  %v111 = vmax.f32 %v103, %v110
  %v112 = vsel %vm57, %v37, -inf
  %v113 = vmax.f32 %v105, %v112
  %v114 = vsel %vm57, %v38, -inf
  %v115 = vmax.f32 %v107, %v114
  %v116 = vsel %vm57, %v39, -inf
  %v117 = vmax.f32 %v109, %v116
  %v118 = vsel %vm57, %v40, -inf
  %v119 = vmax.f32 %v111, %v118
  %v120 = vsel %vm57, %v41, -inf
  %v121 = vmax.f32 %v113, %v120
  %v122 = vsel %vm57, %v42, -inf
  %v123 = vmax.f32 %v115, %v122
  %v124 = vsel %vm57, %v43, -inf
  %v125 = vmax.f32 %v117, %v124
  %v126 = vsel %vm57, %v44, -inf
  %v127 = vmax.f32 %v119, %v126
  %v128 = vsel %vm57, %v45, -inf
  %v129 = vmax.f32 %v121, %v128
  %v130 = vsel %vm57, %v46, -inf
  %v131 = vmax.f32 %v123, %v130
  %v132 = vsel %vm57, %v47, -inf
  %v133 = vmax.f32 %v125, %v132
  %v134 = vsel %vm57, %v48, -inf
  %v135 = vmax.f32 %v127, %v134
  %v136 = vsel %vm57, %v49, -inf
  %v137 = vmax.f32 %v129, %v136
  %v138 = vsel %vm57, %v50, -inf
  %v139 = vmax.f32 %v131, %v138
  %v140 = vsel %vm57, %v51, -inf
  %v141 = vmax.f32 %v133, %v140
  %v142 = vsel %vm57, %v52, -inf
  %v143 = vmax.f32 %v135, %v142
  %v144 = vsel %vm57, %v53, -inf
  %v145 = vmax.f32 %v137, %v144
  %v146 = vsel %vm57, %v54, -inf
  %v147 = vmax.f32 %v139, %v146
  %v148 = vsel %vm57, %v55, -inf
  %v149 = vmax.f32 %v141, %v148
  %v150 = vsel %vm57, %v56, -inf
  %v151 = vmax.f32 %v143, %v150
  %v152 = vmax.f32 %v151, %v145
  %v153 = vmax.f32 %v147, %v149
  %v154 = vmax.f32 %v152, %v153
  %155 = vst [vmem:[%s1] sm:$0xf] %v154
  // Predicated region
  $region6: #{esa_block.9} parent=0 // pred_check
    _
  $region7: #{esa_block.9} parent=0 // pred_check_branch
    %157 = sbr.rel (0) target = $region9
  $region8: #{esa_block.9} parent=0 // pred_region
    _
  $region9: #{esa_block.9} parent=0 // pred_fallthru
    _
  // Predicated region
  $region10: #{esa_block.9} parent=0 // pred_check
    _
  $region11: #{esa_block.9} parent=0 // pred_check_branch
    %159 = sbr.rel (0) target = $region13
  $region12: #{esa_block.9} parent=0 // pred_region
    _
  $region13: #{esa_block.9} parent=0 // pred_fallthru
    _

// kernel: esa_block.10
$region0: #{esa_block.10}
  #allocation0 [shape = 'u32[]', space=smem, size = 0x4, offset = 0x4, fixed_abs, tag = 'smem constant byte address 0x4 - core index']
  #allocation1 [shape = 'u32[72,128]{1,0:T(1,128)}', space=vmem, size = 0x9000, scoped, tag = 'internal scratch']
  %s0 = inlined_call_operand.vmem [shape: bf16[4,36], index: 0, kind: input, shape index: {}]
  %s1 = inlined_call_operand.vmem [shape: f32[36,128], index: 1, kind: input, shape index: {}]
  %s2 = inlined_call_operand.vmem [shape: f32[4,1], index: 2, kind: input, shape index: {}]
  %s3 = inlined_call_operand.vmem [shape: f32[4,128], index: 3, kind: output, shape index: {}]
  %s4 = sld [smem:[#allocation0]]
  $region22: #{esa_block.10} parent=0
    _
  %s6 = ssub.s32 1, %s4
  %s7 = scalar_select 0, %s6, %s4
  // Predicated region
  $region2: #{esa_block.10} parent=0 // pred_check
    _
  $region3: #{esa_block.10} parent=0 // pred_check_branch
    %9 = sbr.rel (0) target = $region5
  $region4: #{esa_block.10} parent=0 // pred_region
    _
  $region5: #{esa_block.10} parent=0 // pred_fallthru
    _
  // Predicated region
  $region6: #{esa_block.10} parent=0 // pred_check
    _
  $region7: #{esa_block.10} parent=0 // pred_check_branch
    %11 = sbr.rel (0) target = $region9
  $region8: #{esa_block.10} parent=0 // pred_region
    _
  $region9: #{esa_block.10} parent=0 // pred_fallthru
    _
  // Predicated region
  $region10: #{esa_block.10} parent=0 // pred_check
    _
  $region11: #{esa_block.10} parent=0 // pred_check_branch
    %13 = sbr.rel (0) target = $region13
  $region12: #{esa_block.10} parent=0 // pred_region
    _
  $region13: #{esa_block.10} parent=0 // pred_fallthru
    _
  %v15 = vld [vmem:[%s0] sm:$0x3]
  %v16 = vld [vmem:[%s1] sm:$0xff]
  %v17 = vld [vmem:[%s1 + $0x8] sm:$0xff]
  %v18 = vld [vmem:[%s1 + $0x10] sm:$0xff]
  %v19 = vld [vmem:[%s1 + $0x18] sm:$0xff]
  %v20 = vld [vmem:[%s1 + $0x20] sm:$0xf]
  %v21 = vpack.c.bf16 %v17, %v16
  %v22 = vpack.c.bf16 %v19, %v18
  %v23 = vpack.c.bf16 %v20, %v20
  %v24 = vld [vmem:[%s2] sm:$0xf]
  %26 = vset.pattern.permute.xlu0 0
  %27 = vperm.xlu0 %26, %v24
  %v28 = vpop.permute.xlu0 %27
  %vm30 = vcmask 293888
  %v32 = vsel %vm30, %v15, 0
  %vm34 = vcmask 1041408
  %v36 = vsel %vm34, %v23, 0
  %38 = vmatpush.bf16.msra.mxu0 0
  %39 = vmatpush.bf16.msra.mxu0 0
  %40 = vmatpush.bf16.msra.mxu0 0
  %41 = vmatpush.bf16.msra.mxu0 0
  %42 = vmatpush.bf16.msra.mxu0 0
  %43 = vmatpush.bf16.msra.mxu0 %v36
  %44 = vmatpush.bf16.msra.mxu0 %v22
  %45 = vmatpush.bf16.msra.mxu0 %v21
  %46 = vmatmul.bf16.gmra.mxu0 %v32
  %v47 = vpop.f32.mrf.mxu0
  %v48 = vadd.f32 %v28, %v47
  %v49 = vpop.f32.mrf.mxu0
  %50 = vdwg.mxu0
  %51 = vst [vmem:[%s3] sm:$0xf] %v48
  // Predicated region
  $region14: #{esa_block.10} parent=0 // pred_check
    _
  $region15: #{esa_block.10} parent=0 // pred_check_branch
    %53 = sbr.rel (0) target = $region17
  $region16: #{esa_block.10} parent=0 // pred_region
    _
  $region17: #{esa_block.10} parent=0 // pred_fallthru
    _
  // Predicated region
  $region18: #{esa_block.10} parent=0 // pred_check
    _
  $region19: #{esa_block.10} parent=0 // pred_check_branch
    %55 = sbr.rel (0) target = $region21
  $region20: #{esa_block.10} parent=0 // pred_region
    _
  $region21: #{esa_block.10} parent=0 // pred_fallthru
    _

// kernel: esa_block.11
$region0: #{esa_block.11}
  #allocation0 [shape = 'u32[]', space=smem, size = 0x4, offset = 0x4, fixed_abs, tag = 'smem constant byte address 0x4 - core index']
  #allocation1 [shape = 'u32[72,128]{1,0:T(1,128)}', space=vmem, size = 0x9000, scoped, tag = 'internal scratch']
  %s0 = inlined_call_operand.vmem [shape: f32[24,2], index: 0, kind: input, shape index: {}]
  %s1 = inlined_call_operand.vmem [shape: f32[2,128], index: 1, kind: input, shape index: {}]
  %s2 = inlined_call_operand.vmem [shape: f32[24,128], index: 2, kind: output, shape index: {}]
  %s3 = sld [smem:[#allocation0]]
  $region18: #{esa_block.11} parent=0
    _
  %s5 = ssub.s32 1, %s3
  %s6 = scalar_select 0, %s5, %s3
  // Predicated region
  $region2: #{esa_block.11} parent=0 // pred_check
    _
  $region3: #{esa_block.11} parent=0 // pred_check_branch
    %8 = sbr.rel (0) target = $region5
  $region4: #{esa_block.11} parent=0 // pred_region
    _
  $region5: #{esa_block.11} parent=0 // pred_fallthru
    _
  // Predicated region
  $region6: #{esa_block.11} parent=0 // pred_check
    _
  $region7: #{esa_block.11} parent=0 // pred_check_branch
    %10 = sbr.rel (0) target = $region9
  $region8: #{esa_block.11} parent=0 // pred_region
    _
  $region9: #{esa_block.11} parent=0 // pred_fallthru
    _
  %v11 = vld [vmem:[%s0] sm:$0xff]
  %v12 = vld [vmem:[%s0 + $0x8] sm:$0xff]
  %v13 = vld [vmem:[%s0 + $0x10] sm:$0xff]
  %v14 = vld [vmem:[%s1] sm:$0x3]
  %vm15 = vcmask 15360
  %v17 = vsel %vm15, %v11, 0
  %v20 = vsel %vm15, %v12, 0
  %v23 = vsel %vm15, %v13, 0
  %vm25 = vcmask 1041408
  %v27 = vsel %vm25, %v14, 0
  %29 = vmatpush.msra.mxu0 0.0
  %30 = vmatpush.msra.mxu0 0.0
  %31 = vmatpush.msra.mxu0 0.0
  %32 = vmatpush.msra.mxu0 0.0
  %33 = vmatpush.msra.mxu0 0.0
  %34 = vmatpush.msra.mxu0 0.0
  %35 = vmatpush.msra.mxu0 0.0
  %36 = vmatpush.msra.mxu0 0.0
  %37 = vmatpush.msra.mxu0 0.0
  %38 = vmatpush.msra.mxu0 0.0
  %39 = vmatpush.msra.mxu0 0.0
  %40 = vmatpush.msra.mxu0 0.0
  %41 = vmatpush.msra.mxu0 0.0
  %42 = vmatpush.msra.mxu0 0.0
  %43 = vmatpush.msra.mxu0 0.0
  %44 = vmatpush.msra.mxu0 %v27
  %45 = vmatmul.f32.gmra.mxu0 %v17
  %v46 = vpop.f32.mrf.mxu0
  %v47 = vadd.f32 0.0, %v46
  %48 = vmatmul.f32.gmra.mxu0 %v20
  %v49 = vpop.f32.mrf.mxu0
  %v50 = vadd.f32 0.0, %v49
  %51 = vmatmul.f32.gmra.mxu0 %v23
  %v52 = vpop.f32.mrf.mxu0
  %v53 = vadd.f32 0.0, %v52
  %54 = vdwg.mxu0
  %55 = vst [vmem:[%s2] sm:$0xff] %v47
  %56 = vst [vmem:[%s2 + $0x8] sm:$0xff] %v50
  %57 = vst [vmem:[%s2 + $0x10] sm:$0xff] %v53
  // Predicated region
  $region10: #{esa_block.11} parent=0 // pred_check
    _
  $region11: #{esa_block.11} parent=0 // pred_check_branch
    %59 = sbr.rel (0) target = $region13
  $region12: #{esa_block.11} parent=0 // pred_region
    _
  $region13: #{esa_block.11} parent=0 // pred_fallthru
    _
  // Predicated region
  $region14: #{esa_block.11} parent=0 // pred_check
    _
  $region15: #{esa_block.11} parent=0 // pred_check_branch
    %61 = sbr.rel (0) target = $region17
  $region16: #{esa_block.11} parent=0 // pred_region
    _
  $region17: #{esa_block.11} parent=0 // pred_fallthru
    _

// kernel: esa_block.12
$region0: #{esa_block.12}
  #allocation0 [shape = 'u32[]', space=smem, size = 0x4, offset = 0x4, fixed_abs, tag = 'smem constant byte address 0x4 - core index']
  #allocation1 [shape = 'u32[72,128]{1,0:T(1,128)}', space=vmem, size = 0x9000, scoped, tag = 'internal scratch']
  %s0 = inlined_call_operand.vmem [shape: f32[192,2], index: 0, kind: input, shape index: {}]
  %s1 = inlined_call_operand.vmem [shape: f32[2,128], index: 1, kind: input, shape index: {}]
  %s2 = inlined_call_operand.vmem [shape: f32[192,128], index: 2, kind: output, shape index: {}]
  %s3 = sld [smem:[#allocation0]]
  $region18: #{esa_block.12} parent=0
    _
  %s5 = ssub.s32 1, %s3
  %s6 = scalar_select 0, %s5, %s3
  // Predicated region
  $region2: #{esa_block.12} parent=0 // pred_check
    _
  $region3: #{esa_block.12} parent=0 // pred_check_branch
    %8 = sbr.rel (0) target = $region5
  $region4: #{esa_block.12} parent=0 // pred_region
    _
  $region5: #{esa_block.12} parent=0 // pred_fallthru
    _
  // Predicated region
  $region6: #{esa_block.12} parent=0 // pred_check
    _
  $region7: #{esa_block.12} parent=0 // pred_check_branch
    %10 = sbr.rel (0) target = $region9
  $region8: #{esa_block.12} parent=0 // pred_region
    _
  $region9: #{esa_block.12} parent=0 // pred_fallthru
    _
  %v11 = vld [vmem:[%s0] sm:$0xff]
  %v12 = vld [vmem:[%s0 + $0x8] sm:$0xff]
  %v13 = vld [vmem:[%s0 + $0x10] sm:$0xff]
  %v14 = vld [vmem:[%s0 + $0x18] sm:$0xff]
  %v15 = vld [vmem:[%s0 + $0x20] sm:$0xff]
  %v16 = vld [vmem:[%s0 + $0x28] sm:$0xff]
  %v17 = vld [vmem:[%s0 + $0x30] sm:$0xff]
  %v18 = vld [vmem:[%s0 + $0x38] sm:$0xff]
  %v19 = vld [vmem:[%s0 + $0x40] sm:$0xff]
  %v20 = vld [vmem:[%s0 + $0x48] sm:$0xff]
  %v21 = vld [vmem:[%s0 + $0x50] sm:$0xff]
  %v22 = vld [vmem:[%s0 + $0x58] sm:$0xff]
  %v23 = vld [vmem:[%s0 + $0x60] sm:$0xff]
  %v24 = vld [vmem:[%s0 + $0x68] sm:$0xff]
  %v25 = vld [vmem:[%s0 + $0x70] sm:$0xff]
  %v26 = vld [vmem:[%s0 + $0x78] sm:$0xff]
  %v27 = vld [vmem:[%s0 + $0x80] sm:$0xff]
  %v28 = vld [vmem:[%s0 + $0x88] sm:$0xff]
  %v29 = vld [vmem:[%s0 + $0x90] sm:$0xff]
  %v30 = vld [vmem:[%s0 + $0x98] sm:$0xff]
  %v31 = vld [vmem:[%s0 + $0xa0] sm:$0xff]
  %v32 = vld [vmem:[%s0 + $0xa8] sm:$0xff]
  %v33 = vld [vmem:[%s0 + $0xb0] sm:$0xff]
  %v34 = vld [vmem:[%s0 + $0xb8] sm:$0xff]
  %v35 = vld [vmem:[%s1] sm:$0x3]
  %vm36 = vcmask 15360
  %v38 = vsel %vm36, %v11, 0
  %v41 = vsel %vm36, %v12, 0
  %v44 = vsel %vm36, %v13, 0
  %v47 = vsel %vm36, %v14, 0
  %v50 = vsel %vm36, %v15, 0
  %v53 = vsel %vm36, %v16, 0
  %v56 = vsel %vm36, %v17, 0
  %v59 = vsel %vm36, %v18, 0
  %v62 = vsel %vm36, %v19, 0
  %v65 = vsel %vm36, %v20, 0
  %v68 = vsel %vm36, %v21, 0
  %v71 = vsel %vm36, %v22, 0
  %v74 = vsel %vm36, %v23, 0
  %v77 = vsel %vm36, %v24, 0
  %v80 = vsel %vm36, %v25, 0
  %v83 = vsel %vm36, %v26, 0
  %v86 = vsel %vm36, %v27, 0
  %v89 = vsel %vm36, %v28, 0
  %v92 = vsel %vm36, %v29, 0
  %v95 = vsel %vm36, %v30, 0
  %v98 = vsel %vm36, %v31, 0
  %v101 = vsel %vm36, %v32, 0
  %v104 = vsel %vm36, %v33, 0
  %v107 = vsel %vm36, %v34, 0
  %vm109 = vcmask 1041408
  %v111 = vsel %vm109, %v35, 0
  %113 = vmatpush.msra.mxu0 0.0
  %114 = vmatpush.msra.mxu0 0.0
  %115 = vmatpush.msra.mxu0 0.0
  %116 = vmatpush.msra.mxu0 0.0
  %117 = vmatpush.msra.mxu0 0.0
  %118 = vmatpush.msra.mxu0 0.0
  %119 = vmatpush.msra.mxu0 0.0
  %120 = vmatpush.msra.mxu0 0.0
  %121 = vmatpush.msra.mxu0 0.0
  %122 = vmatpush.msra.mxu0 0.0
  %123 = vmatpush.msra.mxu0 0.0
  %124 = vmatpush.msra.mxu0 0.0
  %125 = vmatpush.msra.mxu0 0.0
  %126 = vmatpush.msra.mxu0 0.0
  %127 = vmatpush.msra.mxu0 0.0
  %128 = vmatpush.msra.mxu0 %v111
  %129 = vmatmul.f32.gmra.mxu0 %v38
  %v130 = vpop.f32.mrf.mxu0
  %v131 = vadd.f32 0.0, %v130
  %132 = vmatmul.f32.gmra.mxu0 %v41
  %v133 = vpop.f32.mrf.mxu0
  %v134 = vadd.f32 0.0, %v133
  %135 = vmatmul.f32.gmra.mxu0 %v44
  %v136 = vpop.f32.mrf.mxu0
  %v137 = vadd.f32 0.0, %v136
  %138 = vmatmul.f32.gmra.mxu0 %v47
  %v139 = vpop.f32.mrf.mxu0
  %v140 = vadd.f32 0.0, %v139
  %141 = vmatmul.f32.gmra.mxu0 %v50
  %v142 = vpop.f32.mrf.mxu0
  %v143 = vadd.f32 0.0, %v142
  %144 = vmatmul.f32.gmra.mxu0 %v53
  %v145 = vpop.f32.mrf.mxu0
  %v146 = vadd.f32 0.0, %v145
  %147 = vmatmul.f32.gmra.mxu0 %v56
  %v148 = vpop.f32.mrf.mxu0
  %v149 = vadd.f32 0.0, %v148
  %150 = vmatmul.f32.gmra.mxu0 %v59
  %v151 = vpop.f32.mrf.mxu0
  %v152 = vadd.f32 0.0, %v151
  %153 = vmatmul.f32.gmra.mxu0 %v62
  %v154 = vpop.f32.mrf.mxu0
  %v155 = vadd.f32 0.0, %v154
  %156 = vmatmul.f32.gmra.mxu0 %v65
  %v157 = vpop.f32.mrf.mxu0
  %v158 = vadd.f32 0.0, %v157
  %159 = vmatmul.f32.gmra.mxu0 %v68
  %v160 = vpop.f32.mrf.mxu0
  %v161 = vadd.f32 0.0, %v160
  %162 = vmatmul.f32.gmra.mxu0 %v71
  %v163 = vpop.f32.mrf.mxu0
  %v164 = vadd.f32 0.0, %v163
  %165 = vmatmul.f32.gmra.mxu0 %v74
  %v166 = vpop.f32.mrf.mxu0
  %v167 = vadd.f32 0.0, %v166
  %168 = vmatmul.f32.gmra.mxu0 %v77
  %v169 = vpop.f32.mrf.mxu0
  %v170 = vadd.f32 0.0, %v169
  %171 = vmatmul.f32.gmra.mxu0 %v80
  %v172 = vpop.f32.mrf.mxu0
  %v173 = vadd.f32 0.0, %v172
  %174 = vmatmul.f32.gmra.mxu0 %v83
  %v175 = vpop.f32.mrf.mxu0
  %v176 = vadd.f32 0.0, %v175
  %177 = vmatmul.f32.gmra.mxu0 %v86
  %v178 = vpop.f32.mrf.mxu0
  %v179 = vadd.f32 0.0, %v178
  %180 = vmatmul.f32.gmra.mxu0 %v89
  %v181 = vpop.f32.mrf.mxu0
  %v182 = vadd.f32 0.0, %v181
  %183 = vmatmul.f32.gmra.mxu0 %v92
  %v184 = vpop.f32.mrf.mxu0
  %v185 = vadd.f32 0.0, %v184
  %186 = vmatmul.f32.gmra.mxu0 %v95
  %v187 = vpop.f32.mrf.mxu0
  %v188 = vadd.f32 0.0, %v187
  %189 = vmatmul.f32.gmra.mxu0 %v98
  %v190 = vpop.f32.mrf.mxu0
  %v191 = vadd.f32 0.0, %v190
  %192 = vmatmul.f32.gmra.mxu0 %v101
  %v193 = vpop.f32.mrf.mxu0
  %v194 = vadd.f32 0.0, %v193
  %195 = vmatmul.f32.gmra.mxu0 %v104
  %v196 = vpop.f32.mrf.mxu0
  %v197 = vadd.f32 0.0, %v196
  %198 = vmatmul.f32.gmra.mxu0 %v107
  %v199 = vpop.f32.mrf.mxu0
  %v200 = vadd.f32 0.0, %v199
  %201 = vdwg.mxu0
  %202 = vst [vmem:[%s2] sm:$0xff] %v131
  %203 = vst [vmem:[%s2 + $0x8] sm:$0xff] %v134
  %204 = vst [vmem:[%s2 + $0x10] sm:$0xff] %v137
  %205 = vst [vmem:[%s2 + $0x18] sm:$0xff] %v140
  %206 = vst [vmem:[%s2 + $0x20] sm:$0xff] %v143
  %207 = vst [vmem:[%s2 + $0x28] sm:$0xff] %v146
  %208 = vst [vmem:[%s2 + $0x30] sm:$0xff] %v149
  %209 = vst [vmem:[%s2 + $0x38] sm:$0xff] %v152
  %210 = vst [vmem:[%s2 + $0x40] sm:$0xff] %v155
  %211 = vst [vmem:[%s2 + $0x48] sm:$0xff] %v158
  %212 = vst [vmem:[%s2 + $0x50] sm:$0xff] %v161
  %213 = vst [vmem:[%s2 + $0x58] sm:$0xff] %v164
  %214 = vst [vmem:[%s2 + $0x60] sm:$0xff] %v167
  %215 = vst [vmem:[%s2 + $0x68] sm:$0xff] %v170
  %216 = vst [vmem:[%s2 + $0x70] sm:$0xff] %v173
  %217 = vst [vmem:[%s2 + $0x78] sm:$0xff] %v176
  %218 = vst [vmem:[%s2 + $0x80] sm:$0xff] %v179
  %219 = vst [vmem:[%s2 + $0x88] sm:$0xff] %v182
  %220 = vst [vmem:[%s2 + $0x90] sm:$0xff] %v185
  %221 = vst [vmem:[%s2 + $0x98] sm:$0xff] %v188
  %222 = vst [vmem:[%s2 + $0xa0] sm:$0xff] %v191
  %223 = vst [vmem:[%s2 + $0xa8] sm:$0xff] %v194
  %224 = vst [vmem:[%s2 + $0xb0] sm:$0xff] %v197
  %225 = vst [vmem:[%s2 + $0xb8] sm:$0xff] %v200
  // Predicated region
  $region10: #{esa_block.12} parent=0 // pred_check
    _
  $region11: #{esa_block.12} parent=0 // pred_check_branch
    %227 = sbr.rel (0) target = $region13
  $region12: #{esa_block.12} parent=0 // pred_region
    _
  $region13: #{esa_block.12} parent=0 // pred_fallthru
    _
  // Predicated region
  $region14: #{esa_block.12} parent=0 // pred_check
    _
  $region15: #{esa_block.12} parent=0 // pred_check_branch
    %229 = sbr.rel (0) target = $region17
  $region16: #{esa_block.12} parent=0 // pred_region
    _
  $region17: #{esa_block.12} parent=0 // pred_fallthru
    _

// kernel: esa_block.13
$region0: #{esa_block.13}
  #allocation0 [shape = 'u32[]', space=smem, size = 0x4, offset = 0x4, fixed_abs, tag = 'smem constant byte address 0x4 - core index']
  #allocation1 [shape = 'u32[72,128]{1,0:T(1,128)}', space=vmem, size = 0x9000, scoped, tag = 'internal scratch']
  %s0 = inlined_call_operand.vmem [shape: f32[8,1152], index: 0, kind: input, shape index: {}]
  %s1 = inlined_call_operand.vmem [shape: f32[4,1152], index: 1, kind: input, shape index: {}]
  %s2 = inlined_call_operand.vmem [shape: f32[4,1152], index: 2, kind: input, shape index: {}]
  %s3 = inlined_call_operand.vmem [shape: bf16[8,4], index: 3, kind: input, shape index: {}]
  %s4 = inlined_call_operand.vmem [shape: f32[8,1], index: 4, kind: input, shape index: {}]
  %s5 = inlined_call_operand.vmem [shape: f32[8,1152], index: 5, kind: output, shape index: {}]
  %s6 = sld [smem:[#allocation0]]
  $region53: #{esa_block.13} parent=0
    _
  %s8 = ssub.s32 1, %s6
  %s9 = scalar_select 0, %s8, %s6
  loop: start=0, step=1, limit=5
  $region2: #{esa_block.13} parent=0 // loop_pre_header
    _
  $region3: #{esa_block.13} parent=0 // loop_header
    %s11 = sphi 0, %s15
    %p12 = scmp.ge.s32.totalorder %s11, 5
    %s21 = sphi 0, %s23
    %s24 = sphi 0, %s21
    %s25 = sphi 0, %s24
    %s41 = sphi 0, %s25
    %s47 = sphi 0, %s49
    %s50 = sphi 0, %s47
    %s51 = sphi 0, %s50
    %s67 = sphi 0, %s51
    %s73 = sphi 0, %s75
    %s76 = sphi 0, %s73
    %s77 = sphi 0, %s76
    %s93 = sphi 0, %s77
    %s97 = sphi 0, %s97
    %s99 = sphi 0, %s97
    %s100 = sphi 0, %s99
    %s114 = sphi 0, %s100
    %s118 = sphi 0, %s118
    %s120 = sphi 0, %s118
    %s121 = sphi 0, %s120
    %s135 = sphi 0, %s121
    %s141 = sphi 0, %s143
    %s144 = sphi 0, %s141
    %s145 = sphi 0, %s144
    %s161 = sphi 0, %s145
  $region4: #{esa_block.13} parent=0 // loop_header_branch
    %14 = sbr.rel (%p12) target = $region8
  $region5: #{esa_block.13} parent=0 // loop_body
    %s16 = ssub.s32 %s11, 1
    %s17 = ssub.s32 %s11, 2
    %s18 = sadd.s32 %s11, 1
    %s19 = ssub.s32 %s11, %s18
    %p20 = scmp.eq.s32.totalorder %s19, 0
    %s22 = sadd.s32 %s21, 1
    %s23 = scalar_select %p20, %s21, %s22
    %p26 = pneg %p20
    %p27 = scmp.eq.s32.totalorder %s11, 2
    %p28 = por %p26, %p27
    %p29 = scmp.ne.s32.totalorder %s21, %s24
    %p30 = scmp.eq.s32.totalorder %s11, 0
    %p31 = por %p29, %p30
    %p32 = scmp.ne.s32.totalorder %s21, %s24
    %p33 = scmp.eq.s32.totalorder %s16, 2
    %p34 = por %p32, %p33
    %p35 = scmp.ne.s32.totalorder %s24, %s25
    %p36 = scmp.eq.s32.totalorder %s16, 0
    %p37 = por %p35, %p36
    %p38 = scmp.ne.s32.totalorder %s24, %s25
    %p39 = scmp.eq.s32.totalorder %s17, 2
    %p40 = por %p38, %p39
    %p42 = scmp.ne.s32.totalorder %s25, %s41
    %p43 = scmp.eq.s32.totalorder %s17, 0
    %p44 = por %p42, %p43
    %s45 = ssub.s32 %s11, %s18
    %p46 = scmp.eq.s32.totalorder %s45, 0
    %s48 = sadd.s32 %s47, 1
    %s49 = scalar_select %p46, %s47, %s48
    %p52 = pneg %p46
    %p53 = scmp.eq.s32.totalorder %s11, 2
    %p54 = por %p52, %p53
    %p55 = scmp.ne.s32.totalorder %s47, %s50
    %p56 = scmp.eq.s32.totalorder %s11, 0
    %p57 = por %p55, %p56
    %p58 = scmp.ne.s32.totalorder %s47, %s50
    %p59 = scmp.eq.s32.totalorder %s16, 2
    %p60 = por %p58, %p59
    %p61 = scmp.ne.s32.totalorder %s50, %s51
    %p62 = scmp.eq.s32.totalorder %s16, 0
    %p63 = por %p61, %p62
    %p64 = scmp.ne.s32.totalorder %s50, %s51
    %p65 = scmp.eq.s32.totalorder %s17, 2
    %p66 = por %p64, %p65
    %p68 = scmp.ne.s32.totalorder %s51, %s67
    %p69 = scmp.eq.s32.totalorder %s17, 0
    %p70 = por %p68, %p69
    %s71 = ssub.s32 %s11, %s18
    %p72 = scmp.eq.s32.totalorder %s71, 0
    %s74 = sadd.s32 %s73, 1
    %s75 = scalar_select %p72, %s73, %s74
    %p78 = pneg %p72
    %p79 = scmp.eq.s32.totalorder %s11, 2
    %p80 = por %p78, %p79
    %p81 = scmp.ne.s32.totalorder %s73, %s76
    %p82 = scmp.eq.s32.totalorder %s11, 0
    %p83 = por %p81, %p82
    %p84 = scmp.ne.s32.totalorder %s73, %s76
    %p85 = scmp.eq.s32.totalorder %s16, 2
    %p86 = por %p84, %p85
    %p87 = scmp.ne.s32.totalorder %s76, %s77
    %p88 = scmp.eq.s32.totalorder %s16, 0
    %p89 = por %p87, %p88
    %p90 = scmp.ne.s32.totalorder %s76, %s77
    %p91 = scmp.eq.s32.totalorder %s17, 2
    %p92 = por %p90, %p91
    %p94 = scmp.ne.s32.totalorder %s77, %s93
    %p95 = scmp.eq.s32.totalorder %s17, 0
    %p96 = por %p94, %p95
    %s98 = sadd.s32 %s97, 1
    %p101 = scmp.eq.s32.totalorder %s11, 2
    %p102 = scmp.ne.s32.totalorder %s97, %s99
    %p103 = scmp.eq.s32.totalorder %s11, 0
    %p104 = por %p102, %p103
    %p105 = scmp.ne.s32.totalorder %s97, %s99
    %p106 = scmp.eq.s32.totalorder %s16, 2
    %p107 = por %p105, %p106
    %p108 = scmp.ne.s32.totalorder %s99, %s100
    %p109 = scmp.eq.s32.totalorder %s16, 0
    %p110 = por %p108, %p109
    %p111 = scmp.ne.s32.totalorder %s99, %s100
    %p112 = scmp.eq.s32.totalorder %s17, 2
    %p113 = por %p111, %p112
    %p115 = scmp.ne.s32.totalorder %s100, %s114
    %p116 = scmp.eq.s32.totalorder %s17, 0
    %p117 = por %p115, %p116
    %s119 = sadd.s32 %s118, 1
    %p122 = scmp.eq.s32.totalorder %s11, 2
    %p123 = scmp.ne.s32.totalorder %s118, %s120
    %p124 = scmp.eq.s32.totalorder %s11, 0
    %p125 = por %p123, %p124
    %p126 = scmp.ne.s32.totalorder %s118, %s120
    %p127 = scmp.eq.s32.totalorder %s16, 2
    %p128 = por %p126, %p127
    %p129 = scmp.ne.s32.totalorder %s120, %s121
    %p130 = scmp.eq.s32.totalorder %s16, 0
    %p131 = por %p129, %p130
    %p132 = scmp.ne.s32.totalorder %s120, %s121
    %p133 = scmp.eq.s32.totalorder %s17, 2
    %p134 = por %p132, %p133
    %p136 = scmp.ne.s32.totalorder %s121, %s135
    %p137 = scmp.eq.s32.totalorder %s17, 0
    %p138 = por %p136, %p137
    %s139 = ssub.s32 %s11, %s18
    %p140 = scmp.eq.s32.totalorder %s139, 0
    %s142 = sadd.s32 %s141, 1
    %s143 = scalar_select %p140, %s141, %s142
    %p146 = pneg %p140
    %p147 = scmp.eq.s32.totalorder %s11, 2
    %p148 = por %p146, %p147
    %p149 = scmp.ne.s32.totalorder %s141, %s144
    %p150 = scmp.eq.s32.totalorder %s11, 0
    %p151 = por %p149, %p150
    %p152 = scmp.ne.s32.totalorder %s141, %s144
    %p153 = scmp.eq.s32.totalorder %s16, 2
    %p154 = por %p152, %p153
    %p155 = scmp.ne.s32.totalorder %s144, %s145
    %p156 = scmp.eq.s32.totalorder %s16, 0
    %p157 = por %p155, %p156
    %p158 = scmp.ne.s32.totalorder %s144, %s145
    %p159 = scmp.eq.s32.totalorder %s17, 2
    %p160 = por %p158, %p159
    %p162 = scmp.ne.s32.totalorder %s145, %s161
    %p163 = scmp.eq.s32.totalorder %s17, 0
    %p164 = por %p162, %p163
    %p165 = scmp.le.s32.totalorder 1, %s11
    %p166 = scmp.lt.s32.totalorder %s11, 4
    %p167 = pnand %p165, %p166
    %p168 = pneg %p167
    // Predicated region
    $region9: #{esa_block.13} parent=5 // pred_check
      _
    $region10: #{esa_block.13} parent=5 // pred_check_branch
      %170 = sbr.rel (%p167) target = $region12
    $region11: #{esa_block.13} parent=5 // pred_region
      %s171 = ssub.s32 %s11, 1
      // Predicated region
      $region13: #{esa_block.13} parent=11 // pred_check
        %p172 = pneg %p110
      $region14: #{esa_block.13} parent=11 // pred_check_branch
        %174 = sbr.rel (%p172) target = $region16
      $region15: #{esa_block.13} parent=11 // pred_region
        _
      $region16: #{esa_block.13} parent=11 // pred_fallthru
        _
      // Predicated region
      $region17: #{esa_block.13} parent=11 // pred_check
        %p175 = pneg %p131
      $region18: #{esa_block.13} parent=11 // pred_check_branch
        %177 = sbr.rel (%p175) target = $region20
      $region19: #{esa_block.13} parent=11 // pred_region
        _
      $region20: #{esa_block.13} parent=11 // pred_fallthru
        _
    $region12: #{esa_block.13} parent=5 // pred_fallthru
      _
    %p178 = scmp.lt.s32.totalorder %s11, 3
    // Predicated region
    $region21: #{esa_block.13} parent=5 // pred_check
      %p179 = pneg %p178
    $region22: #{esa_block.13} parent=5 // pred_check_branch
      %181 = sbr.rel (%p179) target = $region24
    $region23: #{esa_block.13} parent=5 // pred_region
      // Predicated region
      $region25: #{esa_block.13} parent=23 // pred_check
        %p182 = pneg %p31
      $region26: #{esa_block.13} parent=23 // pred_check_branch
        %184 = sbr.rel (%p182) target = $region28
      $region27: #{esa_block.13} parent=23 // pred_region
        %s185 = smul.u32 3, %s11
        %p186 = scmp.lt.s32.totalorder %s185, 8
        %s187 = scalar_select %p186, %s185, 8
        %s188 = smul.addr %s187, 8
        %s189 = scalar_lea.vmem %s0, %s188
        %s190 = smul.u32 3, %s11
      $region28: #{esa_block.13} parent=23 // pred_fallthru
        _
      // Predicated region
      $region29: #{esa_block.13} parent=23 // pred_check
        %p191 = pneg %p57
      $region30: #{esa_block.13} parent=23 // pred_check_branch
        %193 = sbr.rel (%p191) target = $region32
      $region31: #{esa_block.13} parent=23 // pred_region
        %s194 = smul.u32 3, %s11
        %p195 = scmp.lt.s32.totalorder %s194, 8
        %s196 = scalar_select %p195, %s194, 8
        %s197 = smul.addr %s196, 4
        %s198 = scalar_lea.vmem %s1, %s197
        %s199 = smul.u32 3, %s11
      $region32: #{esa_block.13} parent=23 // pred_fallthru
        _
      // Predicated region
      $region33: #{esa_block.13} parent=23 // pred_check
        %p200 = pneg %p83
      $region34: #{esa_block.13} parent=23 // pred_check_branch
        %202 = sbr.rel (%p200) target = $region36
      $region35: #{esa_block.13} parent=23 // pred_region
        %s203 = smul.u32 3, %s11
        %p204 = scmp.lt.s32.totalorder %s203, 8
        %s205 = scalar_select %p204, %s203, 8
        %s206 = smul.addr %s205, 4
        %s207 = scalar_lea.vmem %s2, %s206
        %s208 = smul.u32 3, %s11
      $region36: #{esa_block.13} parent=23 // pred_fallthru
        _
    $region24: #{esa_block.13} parent=5 // pred_fallthru
      _
    %p209 = scmp.le.s32.totalorder 1, %s11
    %p210 = scmp.lt.s32.totalorder %s11, 4
    %p211 = pnand %p209, %p210
    %p212 = pneg %p211
    // Predicated region
    $region37: #{esa_block.13} parent=5 // pred_check
      _
    $region38: #{esa_block.13} parent=5 // pred_check_branch
      %214 = sbr.rel (%p211) target = $region40
    $region39: #{esa_block.13} parent=5 // pred_region
      %s215 = ssub.s32 %s11, 1
      %s216 = smul.u32 3, %s16
      %p217 = scmp.lt.s32.totalorder %s216, 8
      %s218 = scalar_select %p217, %s216, 8
      %s219 = smul.addr %s218, 8
      %s220 = scalar_lea.vmem %s0, %s219
      %p221 = pneg %p37
      %p222 = pneg %p34
      %s223 = smul.u32 3, %s16
      %p224 = scmp.lt.s32.totalorder %s223, 8
      %s225 = scalar_select %p224, %s223, 8
      %s226 = smul.addr %s225, 4
      %s227 = scalar_lea.vmem %s1, %s226
      %p228 = pneg %p63
      %p229 = pneg %p60
      %s230 = smul.u32 3, %s16
      %p231 = scmp.lt.s32.totalorder %s230, 8
      %s232 = scalar_select %p231, %s230, 8
      %s233 = smul.addr %s232, 4
      %s234 = scalar_lea.vmem %s2, %s233
      %p235 = pneg %p89
      %p236 = pneg %p86
      %p237 = pneg %p110
      %p238 = pneg %p107
      %p239 = pneg %p131
      %p240 = pneg %p128
      %p241 = pneg %p157
      %p242 = pneg %p154
      %s243 = smul.u32 3, %s16
      %p244 = scmp.lt.s32.totalorder %s243, 8
      %s245 = scalar_select %p244, %s243, 8
      %s246 = smul.addr %s245, 8
      %s247 = scalar_lea.vmem %s5, %s246
      %s248 = smul.u32 3, %s16
      %p249 = scmp.lt.s32.totalorder %s248, 8
      %s250 = scalar_select %p249, %s248, 8
      %s251 = smul.addr %s250, 8
      %s252 = scalar_lea.vmem %s0, %s251
      %s253 = smul.u32 3, %s16
      %s254 = smul.u32 3, %s16
      %p255 = scmp.lt.s32.totalorder %s254, 8
      %s256 = scalar_select %p255, %s254, 8
      %s257 = smul.addr %s256, 4
      %s258 = scalar_lea.vmem %s1, %s257
      %s259 = smul.u32 3, %s16
      %s260 = smul.u32 3, %s16
      %p261 = scmp.lt.s32.totalorder %s260, 8
      %s262 = scalar_select %p261, %s260, 8
      %s263 = smul.addr %s262, 4
      %s264 = scalar_lea.vmem %s2, %s263
      %s265 = smul.u32 3, %s16
      %s266 = smul.u32 3, %s16
      %p267 = scmp.lt.s32.totalorder %s266, 8
      %s268 = scalar_select %p267, %s266, 8
      %s269 = smul.addr %s268, 8
      %s270 = scalar_lea.vmem %s5, %s269
      %s271 = smul.u32 3, %s16
      %v273 = vld [vmem:[%s258] sm:$0xff]
      %v274 = vld [vmem:[%s258 + $0x8] sm:$0xf]
      %v275 = vld [vmem:[%s264] sm:$0xff]
      %v276 = vld [vmem:[%s264 + $0x8] sm:$0xf]
      %v277 = vadd.f32 %v273, %v275
      %v278 = vadd.f32 %v274, %v276
      %281 = vst [vmem:[#allocation1] ss:$2 sm:$0xff] %v277
      %s282 = scalar_lea.vmem [#allocation1], 16
      %283 = vst [vmem:[%s282] ss:$2 sm:$0xff] %v278
      %v284 = vld.sshfl [vmem:[#allocation1] sm:$0xff pattern:$0x75316420]
      %v285 = vld.sshfl [vmem:[#allocation1 + $0x8] sm:$0xff pattern:$0x75316420]
      %v286 = vld.sshfl [vmem:[#allocation1 + $0x10] sm:$0xff pattern:$0x75316420]
      %v290 = vpack.c.bf16 %v284, %v284
      %v291 = vpack.c.bf16 %v285, %v285
      %v292 = vpack.c.bf16 %v286, %v286
      %v293 = vld [vmem:[%s3] sm:$0xf]
      %v294 = vld [vmem:[%s4] sm:$0xff]
      %296 = vset.pattern.permute.xlu0 0
      %297 = vperm.xlu0 %296, %v294
      %v298 = vpop.permute.xlu0 %297
      %vm300 = vcmask 31744
      %v302 = vsel %vm300, %v293, 0
      %vm304 = vcmask 1041408
      %v306 = vsel %vm304, %v290, 0
      %v309 = vsel %vm304, %v291, 0
      %v312 = vsel %vm304, %v292, 0
      %314 = vmatpush.bf16.msra.mxu0 0
      %315 = vmatpush.bf16.msra.mxu0 0
      %316 = vmatpush.bf16.msra.mxu0 0
      %317 = vmatpush.bf16.msra.mxu0 0
      %318 = vmatpush.bf16.msra.mxu0 0
      %319 = vmatpush.bf16.msra.mxu0 0
      %320 = vmatpush.bf16.msra.mxu0 0
      %321 = vmatpush.bf16.msra.mxu0 %v306
      %322 = vmatmul.bf16.gmra.mxu0 %v302
      %v323 = vpop.f32.mrf.mxu0
      %v324 = vadd.f32 %v298, %v323
      %v325 = vpop.f32.mrf.mxu0
      %326 = vdwg.mxu0
      %327 = vmatpush.bf16.msra.mxu0 0
      %328 = vmatpush.bf16.msra.mxu0 0
      %329 = vmatpush.bf16.msra.mxu0 0
      %330 = vmatpush.bf16.msra.mxu0 0
      %331 = vmatpush.bf16.msra.mxu0 0
      %332 = vmatpush.bf16.msra.mxu0 0
      %333 = vmatpush.bf16.msra.mxu0 0
      %334 = vmatpush.bf16.msra.mxu0 %v309
      %335 = vmatmul.bf16.gmra.mxu0 %v302
      %v336 = vpop.f32.mrf.mxu0
      %v337 = vadd.f32 %v298, %v336
      %v338 = vpop.f32.mrf.mxu0
      %339 = vdwg.mxu0
      %340 = vmatpush.bf16.msra.mxu0 0
      %341 = vmatpush.bf16.msra.mxu0 0
      %342 = vmatpush.bf16.msra.mxu0 0
      %343 = vmatpush.bf16.msra.mxu0 0
      %344 = vmatpush.bf16.msra.mxu0 0
      %345 = vmatpush.bf16.msra.mxu0 0
      %346 = vmatpush.bf16.msra.mxu0 0
      %347 = vmatpush.bf16.msra.mxu0 %v312
      %348 = vmatmul.bf16.gmra.mxu0 %v302
      %v349 = vpop.f32.mrf.mxu0
      %v350 = vadd.f32 %v298, %v349
      %v351 = vpop.f32.mrf.mxu0
      %352 = vdwg.mxu0
      %v353 = vld [vmem:[%s252] sm:$0xff]
      %v354 = vld [vmem:[%s252 + $0x8] sm:$0xff]
      %v355 = vld [vmem:[%s252 + $0x10] sm:$0xff]
      %v356 = vxor.u32 %v324, 2147483648
      %v357 = vxor.u32 %v337, 2147483648
      %v358 = vxor.u32 %v350, 2147483648
      %v359 = vmul.f32 %v356, 1.442695
      %v360 = vpow.pop %v359
      %v361 = vmul.f32 %v357, 1.442695
      %v362 = vpow.pop %v361
      %v363 = vmul.f32 %v358, 1.442695
      %v364 = vpow.pop %v363
      %v365 = vadd.f32 %v360, 1.0
      %v366 = vadd.f32 %v362, 1.0
      %v367 = vadd.f32 %v364, 1.0
      %v368 = vrcp.pop %v365
      %v369 = vmul.f32 %v365, %v368
      %v370 = vsub.f32 1.0, %v369
      %v371 = vmul.f32 %v368, %v370
      %v372 = vadd.f32 %v368, %v371
      %vm373 = vweird.f32 %v365
      %vm374 = vweird.f32 %v368
      %vm375 = vmor %vm373, %vm374
      %v376 = vsel %vm375, %v368, %v372
      %v377 = vand.u32 2147483647, %v365
      %vm378 = vcmp.eq.f32.partialorder %v377, 8.507059e+37
      %v379 = vand.u32 %v365, 2147483648
      %v380 = vor.u32 1.1754944e-38, %v379
      %v381 = vsel %vm378, %v380, %v376
      %v382 = vmul.f32 1.0, %v381
      %v383 = vrcp.pop %v366
      %v384 = vmul.f32 %v366, %v383
      %v385 = vsub.f32 1.0, %v384
      %v386 = vmul.f32 %v383, %v385
      %v387 = vadd.f32 %v383, %v386
      %vm388 = vweird.f32 %v366
      %vm389 = vweird.f32 %v383
      %vm390 = vmor %vm388, %vm389
      %v391 = vsel %vm390, %v383, %v387
      %v392 = vand.u32 2147483647, %v366
      %vm393 = vcmp.eq.f32.partialorder %v392, 8.507059e+37
      %v394 = vand.u32 %v366, 2147483648
      %v395 = vor.u32 1.1754944e-38, %v394
      %v396 = vsel %vm393, %v395, %v391
      %v397 = vmul.f32 1.0, %v396
      %v398 = vrcp.pop %v367
      %v399 = vmul.f32 %v367, %v398
      %v400 = vsub.f32 1.0, %v399
      %v401 = vmul.f32 %v398, %v400
      %v402 = vadd.f32 %v398, %v401
      %vm403 = vweird.f32 %v367
      %vm404 = vweird.f32 %v398
      %vm405 = vmor %vm403, %vm404
      %v406 = vsel %vm405, %v398, %v402
      %v407 = vand.u32 2147483647, %v367
      %vm408 = vcmp.eq.f32.partialorder %v407, 8.507059e+37
      %v409 = vand.u32 %v367, 2147483648
      %v410 = vor.u32 1.1754944e-38, %v409
      %v411 = vsel %vm408, %v410, %v406
      %v412 = vmul.f32 1.0, %v411
      %v413 = vmul.f32 %v353, %v382
      %v414 = vmul.f32 %v354, %v397
      %v415 = vmul.f32 %v355, %v412
      %416 = vst [vmem:[%s270] sm:$0xff] %v413
      %417 = vst [vmem:[%s270 + $0x8] sm:$0xff] %v414
      %418 = vst [vmem:[%s270 + $0x10] sm:$0xff] %v415
      %s419 = smul.u32 3, %s16
      %p420 = scmp.lt.s32.totalorder %s419, 8
      %s421 = scalar_select %p420, %s419, 8
      %s422 = smul.addr %s421, 8
      %s423 = scalar_lea.vmem %s5, %s422
      // Predicated region
      $region41: #{esa_block.13} parent=39 // pred_check
        %p424 = pneg %p154
      $region42: #{esa_block.13} parent=39 // pred_check_branch
        %426 = sbr.rel (%p424) target = $region44
      $region43: #{esa_block.13} parent=39 // pred_region
        %s427 = smul.u32 3, %s16
      $region44: #{esa_block.13} parent=39 // pred_fallthru
        _
    $region40: #{esa_block.13} parent=5 // pred_fallthru
      _
    %p428 = scmp.le.s32.totalorder 2, %s11
    // Predicated region
    $region45: #{esa_block.13} parent=5 // pred_check
      %p429 = pneg %p428
    $region46: #{esa_block.13} parent=5 // pred_check_branch
      %431 = sbr.rel (%p429) target = $region48
    $region47: #{esa_block.13} parent=5 // pred_region
      %s432 = ssub.s32 %s11, 2
      // Predicated region
      $region49: #{esa_block.13} parent=47 // pred_check
        %p433 = pneg %p160
      $region50: #{esa_block.13} parent=47 // pred_check_branch
        %435 = sbr.rel (%p433) target = $region52
      $region51: #{esa_block.13} parent=47 // pred_region
        %s436 = smul.u32 3, %s17
        %p437 = scmp.lt.s32.totalorder %s436, 8
        %s438 = scalar_select %p437, %s436, 8
        %s439 = smul.addr %s438, 8
        %s440 = scalar_lea.vmem %s5, %s439
      $region52: #{esa_block.13} parent=47 // pred_fallthru
        _
    $region48: #{esa_block.13} parent=5 // pred_fallthru
      _
  $region6: #{esa_block.13} parent=0 // loop_footer
    %s15 = sadd.s32 1, %s11
  $region7: #{esa_block.13} parent=0 // loop_footer_branch
    %10 = sbr.rel target = $region3
  $region8: #{esa_block.13} parent=0 // loop_exit
    _

</llo_original>
